<compile_context>
chip_gen: v5e
topology: v5e:2x2
jax: 0.10.0
libtpu: 0.0.40
codegen_flags: <defaults>
</compile_context>

<pallas_src>
import math

import jax
import jax.numpy as jnp
from jax.experimental import pallas as pl
from jax.experimental.pallas import tpu as pltpu


# --------------------------------------------------------------------------
# Hardware-aware sizing helpers
# --------------------------------------------------------------------------
def _vmem_limit_bytes():
    """Per-generation scoped-VMEM ceiling (~75% of physical): ~48 MiB on v7x
    (64 MiB physical), ~96 MiB on v5e/v6e (128 MiB physical)."""
    try:
        cap = int(pltpu.get_tpu_info().vmem_capacity_bytes)
    except Exception:
        cap = 64 * 1024 * 1024          # conservative (v7x-sized) fallback
    return (cap * 3) // 4


def _pick_tile(dim, cap, base):
    """Largest tile <= cap that is a multiple of `base` and divides `dim`;
    falls back to the full dim (always a legal block)."""
    if dim <= cap:
        return dim
    t = (cap // base) * base
    while t >= base:
        if dim % t == 0:
            return t
        t -= base
    # TODO(synk): prime-ish dims fall back to the full extent, which could
    # exceed the VMEM limit for extremely large feature sizes.
    return dim


def _pick_batch_tile(n, row_bytes, budget, sublane_multiple=False):
    """Largest divisor of `n` whose double-buffered block fits `budget`.
    For n >= 16 keep at least 2 grid steps so both v7x TensorCores get work;
    `sublane_multiple` forces the tile to be a multiple of 8 (required when
    it lands on the second-to-last dim of a 2-D output block).  Falls back to
    the full batch (block == full array dim is always a legal block shape)."""
    for d in range(n, 0, -1):
        if n % d:
            continue
        if d == n and n >= 16:
            continue                        # leave >=2 parallel steps at scale
        if sublane_multiple and d != n and d % 8 != 0:
            continue
        if 2 * d * row_bytes <= budget:
            return d
    return n


# --------------------------------------------------------------------------
# Kernel 1: fused RGBDiff (f32 pixel space) + per-frame linear embedding
#   grid = (N tiles [parallel], K tiles [arbitrary / reduction over F])
#   Accumulates directly into the resident f32 output block (no scratch);
#   the embedding bias is the k==0 initializer.
# --------------------------------------------------------------------------
def _diff_embed_kernel(x_ref, w_ref, b_ref, o_ref):
    bn, t, tk = x_ref.shape
    e = w_ref.shape[1]

    @pl.when(pl.program_id(1) == 0)
    def _():
        o_ref[...] = jnp.zeros_like(o_ref) + b_ref[...]     # bias init

    x = x_ref[...]                                          # (bn, T, tk) f32
    # Temporal difference in f32 (exact diff-then-embed semantics; avoids
    # bf16 cancellation on near-identical frames), bf16 only for the MXU.
    diff = (x[:, 1:, :] - x[:, :-1, :]).astype(jnp.bfloat16)  # (bn, T-1, tk)
    d2 = diff.reshape(bn * (t - 1), tk)
    part = jnp.dot(d2, w_ref[...], preferred_element_type=jnp.float32)
    o_ref[...] += part.reshape(bn, t - 1, e)


def rgbdiff_embed(x3d, w_bf16, b_embed):
    """x3d: (N, T, F) f32 raw frames -> (N, T-1, E) f32 motion embeddings."""
    N, T, F = x3d.shape
    E = w_bf16.shape[1]
    vmem_limit = _vmem_limit_bytes()

    # Keep the full (F, E) bf16 weight resident across all batch tiles when
    # it fits comfortably (no K grid axis); otherwise tile the contraction.
    if F * E * 2 <= vmem_limit // 3:
        tk = F
    else:
        tk = _pick_tile(F, 2048, 128)

    row_bytes = T * tk * 4 + (T - 1) * E * 4
    bn = _pick_batch_tile(N, row_bytes, vmem_limit // 4)
    grid = (N // bn, F // tk)

    flops = 2 * N * (T - 1) * F * E
    bytes_accessed = N * T * F * 4 + F * E * 2 + N * (T - 1) * E * 4

    return pl.pallas_call(
        _diff_embed_kernel,
        out_shape=jax.ShapeDtypeStruct((N, T - 1, E), jnp.float32),
        grid=grid,
        in_specs=[
            pl.BlockSpec((bn, T, tk), lambda i, k: (i, 0, k)),   # frames f32
            pl.BlockSpec((tk, E), lambda i, k: (k, 0)),          # W_embed bf16
            pl.BlockSpec((1, E), lambda i, k: (0, 0)),           # b_embed
        ],
        out_specs=pl.BlockSpec((bn, T - 1, E), lambda i, k: (i, 0, 0)),
        compiler_params=pltpu.CompilerParams(
            dimension_semantics=("parallel", "arbitrary"),
            vmem_limit_bytes=vmem_limit),
        cost_estimate=pl.CostEstimate(flops=flops, transcendentals=0,
                                      bytes_accessed=bytes_accessed),
    )(x3d, w_bf16, b_embed)


# --------------------------------------------------------------------------
# Kernel 2: LayerNorm + single-head self-attention + residual + temporal
#           mean-pool + classifier, batched over a VMEM-sized batch tile.
# --------------------------------------------------------------------------
def _decoder_kernel(emb_ref, wqkv_ref, wo_ref, g_ref, bln_ref,
                    wfc_ref, bfc_ref, o_ref):
    bn, s, e = emb_ref.shape
    x = emb_ref[...]                                        # (bn, S, E) f32

    # LayerNorm over the embedding dim (f32 — v5e VPU/EUP have no bf16).
    mu = jnp.mean(x, axis=-1, keepdims=True)
    var = jnp.mean((x - mu) ** 2, axis=-1, keepdims=True)
    xn = (x - mu) * jax.lax.rsqrt(var + 1e-5) * g_ref[...] + bln_ref[...]

    # Fused QKV projection as ONE flat 2-D bf16 matmul (no broadcast_to of
    # the weight, no per-sample sub-8-row MXU pushes).
    xn2 = xn.reshape(bn * s, e).astype(jnp.bfloat16)
    qkv = jnp.dot(xn2, wqkv_ref[...],
                  preferred_element_type=jnp.float32).reshape(bn, s, 3 * e)
    q = qkv[..., :e]
    k = qkv[..., e:2 * e]
    v = qkv[..., 2 * e:]

    # Genuinely-batched attention; bf16 MXU operands, f32 softmax with the
    # EUP approx reciprocal for the denominator.
    sc = jnp.einsum('bqd,bkd->bqk', q.astype(jnp.bfloat16),
                    k.astype(jnp.bfloat16),
                    preferred_element_type=jnp.float32) * (1.0 / math.sqrt(e))
    sc = sc - jnp.max(sc, axis=-1, keepdims=True)
    p = jnp.exp(sc)
    p = p * pl.reciprocal(jnp.sum(p, axis=-1, keepdims=True), approx=True)
    att = jnp.einsum('bqk,bkd->bqd', p.astype(jnp.bfloat16),
                     v.astype(jnp.bfloat16),
                     preferred_element_type=jnp.float32)    # (bn, S, E)

    # Output projection (flat 2-D bf16 matmul) + residual in f32.
    proj = jnp.dot(att.reshape(bn * s, e).astype(jnp.bfloat16), wo_ref[...],
                   preferred_element_type=jnp.float32).reshape(bn, s, e)
    y = x + proj

    # Temporal mean pool + classifier (classes padded to lane-dense width).
    pooled = jnp.mean(y, axis=1)                            # (bn, E) f32
    o_ref[...] = (jnp.dot(pooled.astype(jnp.bfloat16), wfc_ref[...],
                          preferred_element_type=jnp.float32) + bfc_ref[...])


def decoder(emb, params, n_classes):
    """emb: (N, S, E) f32 motion embeddings (bias included) -> (N, classes)."""
    N, S, E = emb.shape
    vmem_limit = _vmem_limit_bytes()

    # Pad classifier width to a multiple of 128 so the output store is a
    # full, unmasked lane-dense vst; extra columns are sliced off outside.
    c_pad = max(128, ((n_classes + 127) // 128) * 128)
    w_fc, b_fc = params["w_fc"], params["b_fc"]
    if w_fc.shape[1] != c_pad:
        w_fc = jnp.pad(w_fc, ((0, 0), (0, c_pad - w_fc.shape[1])))
        b_fc = jnp.pad(b_fc, ((0, 0), (0, c_pad - b_fc.shape[1])))

    # VMEM-aware batch tile; the 2-D (bn, c_pad) output block needs bn to be
    # a multiple of 8 (or the whole batch).  At toy batch sizes this keeps a
    # single grid step; at scale it splits across both v7x TensorCores.
    row_bytes = S * E * 4 + S * 3 * E * 4 + S * E * 4 + c_pad * 4
    bn = _pick_batch_tile(N, row_bytes, vmem_limit // 4, sublane_multiple=True)
    grid = (N // bn,)

    full2d = lambda shape: pl.BlockSpec(shape, lambda b: (0, 0))

    logits = pl.pallas_call(
        _decoder_kernel,
        out_shape=jax.ShapeDtypeStruct((N, c_pad), jnp.float32),
        grid=grid,
        in_specs=[
            pl.BlockSpec((bn, S, E), lambda b: (b, 0, 0)),   # motion embeds
            full2d((E, 3 * E)),                              # fused W_qkv bf16
            full2d((E, E)),                                  # W_o bf16
            full2d((1, E)),                                  # LN gamma
            full2d((1, E)),                                  # LN beta
            full2d((E, c_pad)),                              # W_fc bf16 (pad)
            full2d((1, c_pad)),                              # b_fc (padded)
        ],
        out_specs=pl.BlockSpec((bn, c_pad), lambda b: (b, 0)),
        compiler_params=pltpu.CompilerParams(
            dimension_semantics=("parallel",),
            vmem_limit_bytes=vmem_limit),
    )(emb, params["w_qkv"].astype(jnp.bfloat16),
      params["w_o"].astype(jnp.bfloat16),
      params["ln_g"], params["ln_b"],
      w_fc.astype(jnp.bfloat16), b_fc)
    return logits[:, :n_classes]


# --------------------------------------------------------------------------
# Parameter init (deterministic, synthetic — no checkpoint loading)
# --------------------------------------------------------------------------
def init_params(key, feat_dim, embed_size, n_classes):
    ks = jax.random.split(key, 4)
    scale = 0.02
    return {
        "w_embed": scale * jax.random.normal(ks[0], (feat_dim, embed_size), jnp.float32),
        "b_embed": jnp.zeros((1, embed_size), jnp.float32),
        "w_qkv": scale * jax.random.normal(ks[1], (embed_size, 3 * embed_size), jnp.float32),
        "w_o": scale * jax.random.normal(ks[2], (embed_size, embed_size), jnp.float32),
        "ln_g": jnp.ones((1, embed_size), jnp.float32),
        "ln_b": jnp.zeros((1, embed_size), jnp.float32),
        "w_fc": scale * jax.random.normal(ks[3], (embed_size, n_classes), jnp.float32),
        "b_fc": jnp.zeros((1, n_classes), jnp.float32),
    }


# --------------------------------------------------------------------------
# Module forward (mode='rgbdiff')
# --------------------------------------------------------------------------
@jax.jit
def video_transformer_motion_forward(clip, params):
    """clip: (N, T, C, H, W) float32 (PyTorch NCHW frames) -> (N, n_classes)."""
    N, T, C, H, W = clip.shape
    F = C * H * W
    n_classes = params["w_fc"].shape[1]

    # Flatten frames; features land on the TPU lane (last) axis.  No separate
    # bf16 cast pass — the diff/cast happens inside the matmul kernel.
    x3d = clip.reshape(N, T, F)

    # Fused RGBDiff + per-frame linear embedding on the MXU.
    emb = rgbdiff_embed(x3d, params["w_embed"].astype(jnp.bfloat16),
                        params["b_embed"])

    # Transformer decoder + classifier.
    return decoder(emb, params, n_classes)


# --------------------------------------------------------------------------
# Pure-JAX reference of the original semantics (diff -> embed -> decoder)
# --------------------------------------------------------------------------
def reference_forward(clip, params):
    N, T, C, H, W = clip.shape
    F = C * H * W
    E = params["w_embed"].shape[1]
    x = clip.reshape(N, T, F)
    diff = x[:, 1:, :] - x[:, :-1, :]                       # RGBDiff
    emb = diff @ params["w_embed"] + params["b_embed"]      # per-frame encode
    mu = emb.mean(-1, keepdims=True)
    var = ((emb - mu) ** 2).mean(-1, keepdims=True)
    xn = (emb - mu) / jnp.sqrt(var + 1e-5) * params["ln_g"] + params["ln_b"]
    wq, wk, wv = jnp.split(params["w_qkv"], 3, axis=1)
    q, k, v = xn @ wq, xn @ wk, xn @ wv
    s = jnp.einsum('bqd,bkd->bqk', q, k) / math.sqrt(E)
    p = jax.nn.softmax(s, axis=-1)
    att = jnp.einsum('bqk,bkd->bqd', p, v)
    y = emb + att @ params["w_o"]
    pooled = y.mean(axis=1)
    return pooled @ params["w_fc"] + params["b_fc"]


# --------------------------------------------------------------------------
if __name__ == "__main__":
    # Small, module-consistent shapes: batch=2, sequence=8 frames, 3x16x16 RGB.
    N, T, C, H, W = 2, 8, 3, 16, 16
    embed_size = 128        # lane-dense embedding width
    n_classes = 101         # UCF-101

    key = jax.random.PRNGKey(0)
    k_clip, k_params = jax.random.split(key)

    clip = jax.random.normal(k_clip, (N, T, C, H, W), jnp.float32)
    params = init_params(k_params, C * H * W, embed_size, n_classes)

    logits = video_transformer_motion_forward(clip, params)
    jax.block_until_ready(logits)

    assert logits.shape == (N, n_classes), logits.shape
    assert logits.dtype == jnp.float32

    # Validate against the f32 pure-JAX reference (bf16 MXU operands and the
    # approx reciprocal introduce ~1e-3-level deviation).
    ref = reference_forward(clip, params)
    max_err = float(jnp.max(jnp.abs(logits - ref)))
    assert max_err < 5e-2, max_err

    print("KERNEL_OK")
</pallas_src>

<mosaic_0001>
module attributes {stable_mosaic.version = 11 : i64} {
  func.func @_diff_embed_kernel(%arg0: i32, %arg1: i32, %arg2: memref<2x8x768xf32, #tpu.memory_space<vmem>>, %arg3: memref<768x128xbf16, #tpu.memory_space<vmem>>, %arg4: memref<1x128xf32, #tpu.memory_space<vmem>>, %arg5: memref<2x7x128xf32, #tpu.memory_space<vmem>>) attributes {dimension_semantics = [#tpu.dimension_semantics<parallel>, #tpu.dimension_semantics<arbitrary>], iteration_bounds = array<i64: 1, 1>, scalar_prefetch = 0 : i64, scratch_operands = 0 : i64, tpu.core_type = #tpu.core_type<tc>, window_params = [{transform_indices = @transform_0, window_bounds = array<i64: 2, 8, 768>}, {transform_indices = @transform_1, window_bounds = array<i64: 768, 128>}, {pipeline_mode = #tpu.pipeline_mode<synchronous>, transform_indices = @transform_2, window_bounds = array<i64: 1, 128>}, {transform_indices = @transform_3, window_bounds = array<i64: 2, 7, 128>}]} {
    %c0_i32 = arith.constant 0 : i32
    %0 = arith.cmpi eq, %arg1, %c0_i32 : i32
    %1 = arith.extui %0 : i1 to i32
    %c0_i32_0 = arith.constant 0 : i32
    %2 = arith.cmpi ne, %1, %c0_i32_0 : i32
    scf.if %2 {
      %cst_11 = arith.constant 0.000000e+00 : f32
      %15 = vector.broadcast %cst_11 : f32 to vector<2x7x128xf32>
      %c0_12 = arith.constant 0 : index
      %c0_13 = arith.constant 0 : index
      %16 = vector.load %arg4[%c0_12, %c0_13] : memref<1x128xf32, #tpu.memory_space<vmem>>, vector<1x128xf32>
      %17 = vector.shape_cast %16 : vector<1x128xf32> to vector<1x1x128xf32>
      %18 = vector.broadcast %17 : vector<1x1x128xf32> to vector<2x7x128xf32>
      %19 = arith.addf %15, %18 : vector<2x7x128xf32>
      %c0_14 = arith.constant 0 : index
      %c0_15 = arith.constant 0 : index
      %c0_16 = arith.constant 0 : index
      %20 = vector.load %arg5[%c0_14, %c0_15, %c0_16] : memref<2x7x128xf32, #tpu.memory_space<vmem>>, vector<2x7x128xf32>
      tpu.vector_store %arg5[%c0_14, %c0_15, %c0_16], %19 {strides = array<i32>} : memref<2x7x128xf32, #tpu.memory_space<vmem>>, vector<2x7x128xf32>,
    } else {
    }
    %c0 = arith.constant 0 : index
    %c0_1 = arith.constant 0 : index
    %c0_2 = arith.constant 0 : index
    %3 = vector.load %arg2[%c0, %c0_1, %c0_2] : memref<2x8x768xf32, #tpu.memory_space<vmem>>, vector<2x8x768xf32>
    %4 = vector.extract_strided_slice %3 {offsets = [0, 1, 0], sizes = [2, 7, 768], strides = [1, 1, 1]} : vector<2x8x768xf32> to vector<2x7x768xf32>
    %5 = vector.extract_strided_slice %3 {offsets = [0, 0, 0], sizes = [2, 7, 768], strides = [1, 1, 1]} : vector<2x8x768xf32> to vector<2x7x768xf32>
    %6 = arith.subf %4, %5 : vector<2x7x768xf32>
    %7 = arith.truncf %6 : vector<2x7x768xf32> to vector<2x7x768xbf16>
    %8 = vector.shape_cast %7 : vector<2x7x768xbf16> to vector<14x768xbf16>
    %c0_3 = arith.constant 0 : index
    %c0_4 = arith.constant 0 : index
    %9 = vector.load %arg3[%c0_3, %c0_4] : memref<768x128xbf16, #tpu.memory_space<vmem>>, vector<768x128xbf16>
    %cst = arith.constant dense<0.000000e+00> : vector<14x128xf32>
    %10 = tpu.matmul %8, %9, %cst {dimension_numbers = #tpu.dot_dimension_numbers<[1], [0], [0], [1], [0, 0, 1, 1], [], []>} : vector<14x768xbf16>, vector<768x128xbf16>, vector<14x128xf32> -> vector<14x128xf32>
    %c0_5 = arith.constant 0 : index
    %c0_6 = arith.constant 0 : index
    %c0_7 = arith.constant 0 : index
    %11 = vector.load %arg5[%c0_5, %c0_6, %c0_7] : memref<2x7x128xf32, #tpu.memory_space<vmem>>, vector<2x7x128xf32>
    %12 = vector.shape_cast %10 : vector<14x128xf32> to vector<2x7x128xf32>
    %13 = arith.addf %11, %12 : vector<2x7x128xf32>
    %c0_8 = arith.constant 0 : index
    %c0_9 = arith.constant 0 : index
    %c0_10 = arith.constant 0 : index
    %14 = vector.load %arg5[%c0_8, %c0_9, %c0_10] : memref<2x7x128xf32, #tpu.memory_space<vmem>>, vector<2x7x128xf32>
    tpu.vector_store %arg5[%c0_8, %c0_9, %c0_10], %13 {strides = array<i32>} : memref<2x7x128xf32, #tpu.memory_space<vmem>>, vector<2x7x128xf32>,
    return
  }
  func.func @transform_0(%arg0: i32, %arg1: i32) -> (i32, i32, i32) {
    %c0_i32 = arith.constant 0 : i32
    %c0_i32_0 = arith.constant 0 : i32
    return %arg0, %c0_i32, %arg1 : i32, i32, i32
  }
  func.func @transform_1(%arg0: i32, %arg1: i32) -> (i32, i32) {
    %c0_i32 = arith.constant 0 : i32
    %c0_i32_0 = arith.constant 0 : i32
    return %arg1, %c0_i32 : i32, i32
  }
  func.func @transform_2(%arg0: i32, %arg1: i32) -> (i32, i32) {
    %c0_i32 = arith.constant 0 : i32
    %c0_i32_0 = arith.constant 0 : i32
    %c0_i32_1 = arith.constant 0 : i32
    return %c0_i32, %c0_i32_0 : i32, i32
  }
  func.func @transform_3(%arg0: i32, %arg1: i32) -> (i32, i32, i32) {
    %c0_i32 = arith.constant 0 : i32
    %c0_i32_0 = arith.constant 0 : i32
    %c0_i32_1 = arith.constant 0 : i32
    return %arg0, %c0_i32, %c0_i32_0 : i32, i32, i32
  }
}

module attributes {stable_mosaic.version = 11 : i64} {
  func.func @_decoder_kernel(%arg0: i32, %arg1: memref<2x7x128xf32, #tpu.memory_space<vmem>>, %arg2: memref<128x384xbf16, #tpu.memory_space<vmem>>, %arg3: memref<128x128xbf16, #tpu.memory_space<vmem>>, %arg4: memref<1x128xf32, #tpu.memory_space<vmem>>, %arg5: memref<1x128xf32, #tpu.memory_space<vmem>>, %arg6: memref<128x128xbf16, #tpu.memory_space<vmem>>, %arg7: memref<1x128xf32, #tpu.memory_space<vmem>>, %arg8: memref<2x128xf32, #tpu.memory_space<vmem>>) attributes {dimension_semantics = [#tpu.dimension_semantics<parallel>], iteration_bounds = array<i64: 1>, scalar_prefetch = 0 : i64, scratch_operands = 0 : i64, tpu.core_type = #tpu.core_type<tc>, window_params = [{transform_indices = @transform_0, window_bounds = array<i64: 2, 7, 128>}, {pipeline_mode = #tpu.pipeline_mode<synchronous>, transform_indices = @transform_1, window_bounds = array<i64: 128, 384>}, {pipeline_mode = #tpu.pipeline_mode<synchronous>, transform_indices = @transform_2, window_bounds = array<i64: 128, 128>}, {pipeline_mode = #tpu.pipeline_mode<synchronous>, transform_indices = @transform_3, window_bounds = array<i64: 1, 128>}, {pipeline_mode = #tpu.pipeline_mode<synchronous>, transform_indices = @transform_4, window_bounds = array<i64: 1, 128>}, {pipeline_mode = #tpu.pipeline_mode<synchronous>, transform_indices = @transform_5, window_bounds = array<i64: 128, 128>}, {pipeline_mode = #tpu.pipeline_mode<synchronous>, transform_indices = @transform_6, window_bounds = array<i64: 1, 128>}, {transform_indices = @transform_7, window_bounds = array<i64: 2, 128>}]} {
    %c0 = arith.constant 0 : index
    %c0_0 = arith.constant 0 : index
    %c0_1 = arith.constant 0 : index
    %0 = vector.load %arg1[%c0, %c0_0, %c0_1] : memref<2x7x128xf32, #tpu.memory_space<vmem>>, vector<2x7x128xf32>
    %cst = arith.constant dense<0.000000e+00> : vector<2x7xf32>
    %1 = vector.multi_reduction <add>, %0, %cst [2] : vector<2x7x128xf32> to vector<2x7xf32>
    %2 = vector.shape_cast %1 : vector<2x7xf32> to vector<2x7x1xf32>
    %cst_2 = arith.constant 1.280000e+02 : f32
    %3 = vector.broadcast %cst_2 : f32 to vector<2x7x1xf32>
    %4 = arith.divf %2, %3 : vector<2x7x1xf32>
    %5 = vector.broadcast %4 : vector<2x7x1xf32> to vector<2x7x128xf32>
    %6 = arith.subf %0, %5 : vector<2x7x128xf32>
    %7 = arith.mulf %6, %6 : vector<2x7x128xf32>
    %cst_3 = arith.constant dense<0.000000e+00> : vector<2x7xf32>
    %8 = vector.multi_reduction <add>, %7, %cst_3 [2] : vector<2x7x128xf32> to vector<2x7xf32>
    %9 = vector.shape_cast %8 : vector<2x7xf32> to vector<2x7x1xf32>
    %cst_4 = arith.constant 1.280000e+02 : f32
    %10 = vector.broadcast %cst_4 : f32 to vector<2x7x1xf32>
    %11 = arith.divf %9, %10 : vector<2x7x1xf32>
    %12 = vector.broadcast %4 : vector<2x7x1xf32> to vector<2x7x128xf32>
    %13 = arith.subf %0, %12 : vector<2x7x128xf32>
    %cst_5 = arith.constant 9.99999974E-6 : f32
    %14 = vector.broadcast %cst_5 : f32 to vector<2x7x1xf32>
    %15 = arith.addf %11, %14 : vector<2x7x1xf32>
    %16 = math.rsqrt %15 : vector<2x7x1xf32>
    %17 = vector.broadcast %16 : vector<2x7x1xf32> to vector<2x7x128xf32>
    %18 = arith.mulf %13, %17 : vector<2x7x128xf32>
    %c0_6 = arith.constant 0 : index
    %c0_7 = arith.constant 0 : index
    %19 = vector.load %arg4[%c0_6, %c0_7] : memref<1x128xf32, #tpu.memory_space<vmem>>, vector<1x128xf32>
    %20 = vector.shape_cast %19 : vector<1x128xf32> to vector<1x1x128xf32>
    %21 = vector.broadcast %20 : vector<1x1x128xf32> to vector<2x7x128xf32>
    %22 = arith.mulf %18, %21 : vector<2x7x128xf32>
    %c0_8 = arith.constant 0 : index
    %c0_9 = arith.constant 0 : index
    %23 = vector.load %arg5[%c0_8, %c0_9] : memref<1x128xf32, #tpu.memory_space<vmem>>, vector<1x128xf32>
    %24 = vector.shape_cast %23 : vector<1x128xf32> to vector<1x1x128xf32>
    %25 = vector.broadcast %24 : vector<1x1x128xf32> to vector<2x7x128xf32>
    %26 = arith.addf %22, %25 : vector<2x7x128xf32>
    %27 = vector.shape_cast %26 : vector<2x7x128xf32> to vector<14x128xf32>
    %28 = arith.truncf %27 : vector<14x128xf32> to vector<14x128xbf16>
    %c0_10 = arith.constant 0 : index
    %c0_11 = arith.constant 0 : index
    %29 = vector.load %arg2[%c0_10, %c0_11] : memref<128x384xbf16, #tpu.memory_space<vmem>>, vector<128x384xbf16>
    %cst_12 = arith.constant dense<0.000000e+00> : vector<14x384xf32>
    %30 = tpu.matmul %28, %29, %cst_12 {dimension_numbers = #tpu.dot_dimension_numbers<[1], [0], [0], [1], [0, 0, 1, 1], [], []>} : vector<14x128xbf16>, vector<128x384xbf16>, vector<14x384xf32> -> vector<14x384xf32>
    %31 = vector.shape_cast %30 : vector<14x384xf32> to vector<2x7x384xf32>
    %32 = vector.extract_strided_slice %31 {offsets = [0, 0, 0], sizes = [2, 7, 128], strides = [1, 1, 1]} : vector<2x7x384xf32> to vector<2x7x128xf32>
    %33 = vector.extract_strided_slice %31 {offsets = [0, 0, 128], sizes = [2, 7, 128], strides = [1, 1, 1]} : vector<2x7x384xf32> to vector<2x7x128xf32>
    %34 = vector.extract_strided_slice %31 {offsets = [0, 0, 256], sizes = [2, 7, 128], strides = [1, 1, 1]} : vector<2x7x384xf32> to vector<2x7x128xf32>
    %35 = arith.truncf %32 : vector<2x7x128xf32> to vector<2x7x128xbf16>
    %36 = arith.truncf %33 : vector<2x7x128xf32> to vector<2x7x128xbf16>
    "tpu.trace_start"() <{level = 10 : i32, message = "bqd,bkd->bqk"}> : () -> ()
    %cst_13 = arith.constant dense<0.000000e+00> : vector<2x7x7xf32>
    %37 = tpu.matmul %35, %36, %cst_13 {dimension_numbers = #tpu.dot_dimension_numbers<[2], [2], [1], [1], [0, 0, 0, 1, 1, 1], [0], [0]>} : vector<2x7x128xbf16>, vector<2x7x128xbf16>, vector<2x7x7xf32> -> vector<2x7x7xf32>
    "tpu.trace_stop"() : () -> ()
    %cst_14 = arith.constant 0.0883883461 : f32
    %38 = vector.broadcast %cst_14 : f32 to vector<2x7x7xf32>
    %39 = arith.mulf %37, %38 : vector<2x7x7xf32>
    %cst_15 = arith.constant dense<0xFF800000> : vector<2x7xf32>
    %40 = vector.multi_reduction <maximumf>, %39, %cst_15 [2] : vector<2x7x7xf32> to vector<2x7xf32>
    %41 = vector.shape_cast %40 : vector<2x7xf32> to vector<2x7x1xf32>
    %42 = vector.broadcast %41 : vector<2x7x1xf32> to vector<2x7x7xf32>
    %43 = arith.subf %39, %42 : vector<2x7x7xf32>
    %44 = math.exp %43 : vector<2x7x7xf32>
    %cst_16 = arith.constant dense<0.000000e+00> : vector<2x7xf32>
    %45 = vector.multi_reduction <add>, %44, %cst_16 [2] : vector<2x7x7xf32> to vector<2x7xf32>
    %46 = vector.shape_cast %45 : vector<2x7xf32> to vector<2x7x1xf32>
    %47 = tpu.reciprocal %46 {approx = true} : vector<2x7x1xf32> -> vector<2x7x1xf32>
    %48 = vector.broadcast %47 : vector<2x7x1xf32> to vector<2x7x7xf32>
    %49 = arith.mulf %44, %48 : vector<2x7x7xf32>
    %50 = arith.truncf %49 : vector<2x7x7xf32> to vector<2x7x7xbf16>
    %51 = arith.truncf %34 : vector<2x7x128xf32> to vector<2x7x128xbf16>
    "tpu.trace_start"() <{level = 10 : i32, message = "bqk,bkd->bqd"}> : () -> ()
    %cst_17 = arith.constant dense<0.000000e+00> : vector<2x7x128xf32>
    %52 = tpu.matmul %50, %51, %cst_17 {dimension_numbers = #tpu.dot_dimension_numbers<[2], [1], [1], [2], [0, 0, 0, 1, 1, 2], [0], [0]>} : vector<2x7x7xbf16>, vector<2x7x128xbf16>, vector<2x7x128xf32> -> vector<2x7x128xf32>
    "tpu.trace_stop"() : () -> ()
    %53 = vector.shape_cast %52 : vector<2x7x128xf32> to vector<14x128xf32>
    %54 = arith.truncf %53 : vector<14x128xf32> to vector<14x128xbf16>
    %c0_18 = arith.constant 0 : index
    %c0_19 = arith.constant 0 : index
    %55 = vector.load %arg3[%c0_18, %c0_19] : memref<128x128xbf16, #tpu.memory_space<vmem>>, vector<128x128xbf16>
    %cst_20 = arith.constant dense<0.000000e+00> : vector<14x128xf32>
    %56 = tpu.matmul %54, %55, %cst_20 {dimension_numbers = #tpu.dot_dimension_numbers<[1], [0], [0], [1], [0, 0, 1, 1], [], []>} : vector<14x128xbf16>, vector<128x128xbf16>, vector<14x128xf32> -> vector<14x128xf32>
    %57 = vector.shape_cast %56 : vector<14x128xf32> to vector<2x7x128xf32>
    %58 = arith.addf %0, %57 : vector<2x7x128xf32>
    %cst_21 = arith.constant dense<0.000000e+00> : vector<2x128xf32>
    %59 = vector.multi_reduction <add>, %58, %cst_21 [1] : vector<2x7x128xf32> to vector<2x128xf32>
    %cst_22 = arith.constant 7.000000e+00 : f32
    %60 = vector.broadcast %cst_22 : f32 to vector<2x128xf32>
    %61 = arith.divf %59, %60 : vector<2x128xf32>
    %62 = arith.truncf %61 : vector<2x128xf32> to vector<2x128xbf16>
    %c0_23 = arith.constant 0 : index
    %c0_24 = arith.constant 0 : index
    %63 = vector.load %arg6[%c0_23, %c0_24] : memref<128x128xbf16, #tpu.memory_space<vmem>>, vector<128x128xbf16>
    %cst_25 = arith.constant dense<0.000000e+00> : vector<2x128xf32>
    %64 = tpu.matmul %62, %63, %cst_25 {dimension_numbers = #tpu.dot_dimension_numbers<[1], [0], [0], [1], [0, 0, 1, 1], [], []>} : vector<2x128xbf16>, vector<128x128xbf16>, vector<2x128xf32> -> vector<2x128xf32>
    %c0_26 = arith.constant 0 : index
    %c0_27 = arith.constant 0 : index
    %65 = vector.load %arg7[%c0_26, %c0_27] : memref<1x128xf32, #tpu.memory_space<vmem>>, vector<1x128xf32>
    %66 = vector.broadcast %65 : vector<1x128xf32> to vector<2x128xf32>
    %67 = arith.addf %64, %66 : vector<2x128xf32>
    %c0_28 = arith.constant 0 : index
    %c0_29 = arith.constant 0 : index
    %68 = vector.load %arg8[%c0_28, %c0_29] : memref<2x128xf32, #tpu.memory_space<vmem>>, vector<2x128xf32>
    tpu.vector_store %arg8[%c0_28, %c0_29], %67 {strides = array<i32>} : memref<2x128xf32, #tpu.memory_space<vmem>>, vector<2x128xf32>,
    return
  }
  func.func @transform_0(%arg0: i32) -> (i32, i32, i32) {
    %c0_i32 = arith.constant 0 : i32
    %c0_i32_0 = arith.constant 0 : i32
    %c0_i32_1 = arith.constant 0 : i32
    return %arg0, %c0_i32, %c0_i32_0 : i32, i32, i32
  }
  func.func @transform_1(%arg0: i32) -> (i32, i32) {
    %c0_i32 = arith.constant 0 : i32
    %c0_i32_0 = arith.constant 0 : i32
    %c0_i32_1 = arith.constant 0 : i32
    return %c0_i32, %c0_i32_0 : i32, i32
  }
  func.func @transform_2(%arg0: i32) -> (i32, i32) {
    %c0_i32 = arith.constant 0 : i32
    %c0_i32_0 = arith.constant 0 : i32
    %c0_i32_1 = arith.constant 0 : i32
    return %c0_i32, %c0_i32_0 : i32, i32
  }
  func.func @transform_3(%arg0: i32) -> (i32, i32) {
    %c0_i32 = arith.constant 0 : i32
    %c0_i32_0 = arith.constant 0 : i32
    %c0_i32_1 = arith.constant 0 : i32
    return %c0_i32, %c0_i32_0 : i32, i32
  }
  func.func @transform_4(%arg0: i32) -> (i32, i32) {
    %c0_i32 = arith.constant 0 : i32
    %c0_i32_0 = arith.constant 0 : i32
    %c0_i32_1 = arith.constant 0 : i32
    return %c0_i32, %c0_i32_0 : i32, i32
  }
  func.func @transform_5(%arg0: i32) -> (i32, i32) {
    %c0_i32 = arith.constant 0 : i32
    %c0_i32_0 = arith.constant 0 : i32
    %c0_i32_1 = arith.constant 0 : i32
    return %c0_i32, %c0_i32_0 : i32, i32
  }
  func.func @transform_6(%arg0: i32) -> (i32, i32) {
    %c0_i32 = arith.constant 0 : i32
    %c0_i32_0 = arith.constant 0 : i32
    %c0_i32_1 = arith.constant 0 : i32
    return %c0_i32, %c0_i32_0 : i32, i32
  }
  func.func @transform_7(%arg0: i32) -> (i32, i32) {
    %c0_i32 = arith.constant 0 : i32
    %c0_i32_0 = arith.constant 0 : i32
    return %arg0, %c0_i32 : i32, i32
  }
}

</mosaic_0001>

<llo_original>
// kernel: video_transformer_motion_forward.2
$region0: #{video_transformer_motion_forward.2}
  #allocation0 [shape = 'u32[]', space=smem, size = 0x4, offset = 0x4, fixed_abs, tag = 'smem constant byte address 0x4 - core index']
  #allocation1 [shape = 'u32[72,128]{1,0:T(1,128)}', space=vmem, size = 0x9000, scoped, tag = 'internal scratch']
  %s0 = inlined_call_operand.vmem [shape: f32[2,8,768], index: 0, kind: input, shape index: {}]
  %s1 = inlined_call_operand.vmem [shape: bf16[768,128], index: 1, kind: input, shape index: {}]
  %s2 = inlined_call_operand.vmem [shape: f32[1,128], index: 2, kind: input, shape index: {}]
  %s3 = inlined_call_operand.vmem [shape: f32[2,7,128], index: 3, kind: output, shape index: {}]
  %s4 = sld [smem:[#allocation0]]
  $region26: #{video_transformer_motion_forward.2} parent=0
    _
  %s6 = ssub.s32 1, %s4
  %s7 = scalar_select 0, %s6, %s4
  // Predicated region
  $region2: #{video_transformer_motion_forward.2} parent=0 // pred_check
    _
  $region3: #{video_transformer_motion_forward.2} parent=0 // pred_check_branch
    %9 = sbr.rel (0) target = $region5
  $region4: #{video_transformer_motion_forward.2} parent=0 // pred_region
    _
  $region5: #{video_transformer_motion_forward.2} parent=0 // pred_fallthru
    _
  // Predicated region
  $region6: #{video_transformer_motion_forward.2} parent=0 // pred_check
    _
  $region7: #{video_transformer_motion_forward.2} parent=0 // pred_check_branch
    %11 = sbr.rel (0) target = $region9
  $region8: #{video_transformer_motion_forward.2} parent=0 // pred_region
    _
  $region9: #{video_transformer_motion_forward.2} parent=0 // pred_fallthru
    _
  // Predicated region
  $region10: #{video_transformer_motion_forward.2} parent=0 // pred_check
    _
  $region11: #{video_transformer_motion_forward.2} parent=0 // pred_check_branch
    %13 = sbr.rel (0) target = $region13
  $region12: #{video_transformer_motion_forward.2} parent=0 // pred_region
    _
  $region13: #{video_transformer_motion_forward.2} parent=0 // pred_fallthru
    _
  %p14 = scmp.eq.s32.totalorder 0, 0
  // Predicated region
  $region14: #{video_transformer_motion_forward.2} parent=0 // pred_check
    %p15 = pneg %p14
  $region15: #{video_transformer_motion_forward.2} parent=0 // pred_check_branch
    %17 = sbr.rel (%p15) target = $region17
  $region16: #{video_transformer_motion_forward.2} parent=0 // pred_region
    %v18 = vld [vmem:[%s2] sm:$0x1]
    %v20 = vperm.slane %v18, 0
    %v22 = vadd.f32 %v20, 0.0
    %23 = vst [vmem:[%s3] sm:$0x7f] %v22
    %24 = vst [vmem:[%s3 + $0x8] sm:$0x7f] %v22
  $region17: #{video_transformer_motion_forward.2} parent=0 // pred_fallthru
    _
  %v25 = vld [vmem:[%s0] sm:$0xff]
  %v26 = vld [vmem:[%s0 + $0x8] sm:$0xff]
  %v27 = vld [vmem:[%s0 + $0x10] sm:$0xff]
  %v28 = vld [vmem:[%s0 + $0x18] sm:$0xff]
  %v29 = vld [vmem:[%s0 + $0x20] sm:$0xff]
  %v30 = vld [vmem:[%s0 + $0x28] sm:$0xff]
  %v31 = vld [vmem:[%s0 + $0x30] sm:$0xff]
  %v32 = vld [vmem:[%s0 + $0x38] sm:$0xff]
  %v33 = vld [vmem:[%s0 + $0x40] sm:$0xff]
  %v34 = vld [vmem:[%s0 + $0x48] sm:$0xff]
  %v35 = vld [vmem:[%s0 + $0x50] sm:$0xff]
  %v36 = vld [vmem:[%s0 + $0x58] sm:$0xff]
  %v49 = vrot.slane %v25, 7
  %v50 = vrot.slane %v26, 7
  %v51 = vrot.slane %v27, 7
  %v52 = vrot.slane %v28, 7
  %v53 = vrot.slane %v29, 7
  %v54 = vrot.slane %v30, 7
  %v55 = vrot.slane %v31, 7
  %v56 = vrot.slane %v32, 7
  %v57 = vrot.slane %v33, 7
  %v58 = vrot.slane %v34, 7
  %v59 = vrot.slane %v35, 7
  %v60 = vrot.slane %v36, 7
  %v73 = vsub.f32 %v25, %v49
  %v74 = vsub.f32 %v26, %v50
  %v75 = vsub.f32 %v27, %v51
  %v76 = vsub.f32 %v28, %v52
  %v77 = vsub.f32 %v29, %v53
  %v78 = vsub.f32 %v30, %v54
  %v79 = vsub.f32 %v31, %v55
  %v80 = vsub.f32 %v32, %v56
  %v81 = vsub.f32 %v33, %v57
  %v82 = vsub.f32 %v34, %v58
  %v83 = vsub.f32 %v35, %v59
  %v84 = vsub.f32 %v36, %v60
  %v85 = vpack.c.bf16 %v74, %v73
  %v86 = vpack.c.bf16 %v76, %v75
  %v87 = vpack.c.bf16 %v78, %v77
  %v88 = vpack.c.bf16 %v80, %v79
  %v89 = vpack.c.bf16 %v82, %v81
  %v90 = vpack.c.bf16 %v84, %v83
  %v97 = vrot.slane %v85, 3
  %v98 = vrot.slane %v86, 6
  %v99 = vrot.slane %v86, 1
  %v100 = vrot.slane %v87, 4
  %v101 = vrot.slane %v87, 7
  %v102 = vrot.slane %v88, 3
  %v103 = vrot.slane %v89, 6
  %v104 = vrot.slane %v89, 1
  %v105 = vrot.slane %v90, 4
  %v106 = vrot.slane %v90, 7
  %vm107 = vcmask 1040384
  %v110 = vsel %vm107, %v85, %v97
  %vm111 = vcmask 1041408
  %v113 = vsel %vm111, %v110, %v98
  %vm114 = vcmask 1043459
  %v117 = vsel %vm114, %v99, %v100
  %vm118 = vcmask 1044483
  %v120 = vsel %vm118, %v117, %v101
  %vm121 = vcmask 1042432
  %v122 = vsel %vm121, %v113, %v120
  %vm124 = vcmask 1041409
  %v125 = vsel %vm124, %v85, %v97
  %vm126 = vcmask 1042433
  %v127 = vsel %vm126, %v125, %v98
  %vm128 = vcmask 1044484
  %v129 = vsel %vm128, %v99, %v100
  %vm130 = vcmask 1045508
  %v131 = vsel %vm130, %v129, %v101
  %vm132 = vcmask 1043457
  %v133 = vsel %vm132, %v127, %v131
  %v135 = vrot.slane %v133, 1
  %vm136 = vcmask 1042434
  %v137 = vsel %vm136, %v85, %v97
  %vm138 = vcmask 1043458
  %v139 = vsel %vm138, %v137, %v98
  %vm140 = vcmask 1045509
  %v141 = vsel %vm140, %v99, %v100
  %vm142 = vcmask 1046533
  %v143 = vsel %vm142, %v141, %v101
  %vm144 = vcmask 1044482
  %v145 = vsel %vm144, %v139, %v143
  %v147 = vrot.slane %v145, 2
  %v148 = vsel %vm114, %v85, %v97
  %v149 = vsel %vm118, %v148, %v98
  %vm150 = vcmask 1046534
  %v151 = vsel %vm150, %v99, %v100
  %vm152 = vcmask 1045504
  %v153 = vsel %vm152, %v101, %v151
  %vm154 = vcmask 1045507
  %v155 = vsel %vm154, %v149, %v153
  %v157 = vrot.slane %v155, 3
  %v160 = vsel %vm107, %v88, %v102
  %v162 = vsel %vm111, %v160, %v103
  %v165 = vsel %vm114, %v104, %v105
  %v167 = vsel %vm118, %v165, %v106
  %v168 = vsel %vm121, %v162, %v167
  %v170 = vsel %vm124, %v88, %v102
  %v171 = vsel %vm126, %v170, %v103
  %v172 = vsel %vm128, %v104, %v105
  %v173 = vsel %vm130, %v172, %v106
  %v174 = vsel %vm132, %v171, %v173
  %v176 = vrot.slane %v174, 1
  %v177 = vsel %vm136, %v88, %v102
  %v178 = vsel %vm138, %v177, %v103
  %v179 = vsel %vm140, %v104, %v105
  %v180 = vsel %vm142, %v179, %v106
  %v181 = vsel %vm144, %v178, %v180
  %v183 = vrot.slane %v181, 2
  %v184 = vsel %vm114, %v88, %v102
  %v185 = vsel %vm118, %v184, %v103
  %v186 = vsel %vm150, %v104, %v105
  %v187 = vsel %vm152, %v106, %v186
  %v188 = vsel %vm154, %v185, %v187
  %v190 = vrot.slane %v188, 3
  %v191 = vunpack.i.h.s16 %v122
  %v192 = vunpack.i.l.s16 %v135
  %v193 = vunpack.i.h.s16 %v135
  %v194 = vunpack.i.l.s16 %v147
  %v195 = vunpack.i.h.s16 %v147
  %v196 = vunpack.i.l.s16 %v157
  %v197 = vunpack.i.h.s16 %v157
  %v198 = vunpack.i.h.s16 %v168
  %v199 = vunpack.i.l.s16 %v176
  %v200 = vunpack.i.h.s16 %v176
  %v201 = vunpack.i.l.s16 %v183
  %v202 = vunpack.i.h.s16 %v183
  %v203 = vunpack.i.l.s16 %v190
  %v204 = vunpack.i.h.s16 %v190
  %v205 = vld [vmem:[%s1] sm:$0xf]
  %v206 = vld [vmem:[%s1 + $0x4] sm:$0xf]
  %v207 = vld [vmem:[%s1 + $0x8] sm:$0xf]
  %v208 = vld [vmem:[%s1 + $0xc] sm:$0xf]
  %v209 = vld [vmem:[%s1 + $0x10] sm:$0xf]
  %v210 = vld [vmem:[%s1 + $0x14] sm:$0xf]
  %v211 = vld [vmem:[%s1 + $0x18] sm:$0xf]
  %v212 = vld [vmem:[%s1 + $0x1c] sm:$0xf]
  %v213 = vld [vmem:[%s1 + $0x20] sm:$0xf]
  %v214 = vld [vmem:[%s1 + $0x24] sm:$0xf]
  %v215 = vld [vmem:[%s1 + $0x28] sm:$0xf]
  %v216 = vld [vmem:[%s1 + $0x2c] sm:$0xf]
  %v217 = vld [vmem:[%s1 + $0x30] sm:$0xf]
  %v218 = vld [vmem:[%s1 + $0x34] sm:$0xf]
  %v219 = vld [vmem:[%s1 + $0x38] sm:$0xf]
  %v220 = vld [vmem:[%s1 + $0x3c] sm:$0xf]
  %v221 = vld [vmem:[%s1 + $0x40] sm:$0xf]
  %v222 = vld [vmem:[%s1 + $0x44] sm:$0xf]
  %v223 = vld [vmem:[%s1 + $0x48] sm:$0xf]
  %v224 = vld [vmem:[%s1 + $0x4c] sm:$0xf]
  %v225 = vld [vmem:[%s1 + $0x50] sm:$0xf]
  %v226 = vld [vmem:[%s1 + $0x54] sm:$0xf]
  %v227 = vld [vmem:[%s1 + $0x58] sm:$0xf]
  %v228 = vld [vmem:[%s1 + $0x5c] sm:$0xf]
  %v229 = vld [vmem:[%s1 + $0x60] sm:$0xf]
  %v230 = vld [vmem:[%s1 + $0x64] sm:$0xf]
  %v231 = vld [vmem:[%s1 + $0x68] sm:$0xf]
  %v232 = vld [vmem:[%s1 + $0x6c] sm:$0xf]
  %v233 = vld [vmem:[%s1 + $0x70] sm:$0xf]
  %v234 = vld [vmem:[%s1 + $0x74] sm:$0xf]
  %v235 = vld [vmem:[%s1 + $0x78] sm:$0xf]
  %v236 = vld [vmem:[%s1 + $0x7c] sm:$0xf]
  %v237 = vld [vmem:[%s1 + $0x80] sm:$0xf]
  %v238 = vld [vmem:[%s1 + $0x84] sm:$0xf]
  %v239 = vld [vmem:[%s1 + $0x88] sm:$0xf]
  %v240 = vld [vmem:[%s1 + $0x8c] sm:$0xf]
  %v241 = vld [vmem:[%s1 + $0x90] sm:$0xf]
  %v242 = vld [vmem:[%s1 + $0x94] sm:$0xf]
  %v243 = vld [vmem:[%s1 + $0x98] sm:$0xf]
  %v244 = vld [vmem:[%s1 + $0x9c] sm:$0xf]
  %v245 = vld [vmem:[%s1 + $0xa0] sm:$0xf]
  %v246 = vld [vmem:[%s1 + $0xa4] sm:$0xf]
  %v247 = vld [vmem:[%s1 + $0xa8] sm:$0xf]
  %v248 = vld [vmem:[%s1 + $0xac] sm:$0xf]
  %v249 = vld [vmem:[%s1 + $0xb0] sm:$0xf]
  %v250 = vld [vmem:[%s1 + $0xb4] sm:$0xf]
  %v251 = vld [vmem:[%s1 + $0xb8] sm:$0xf]
  %v252 = vld [vmem:[%s1 + $0xbc] sm:$0xf]
  %v253 = vld [vmem:[%s1 + $0xc0] sm:$0xf]
  %v254 = vld [vmem:[%s1 + $0xc4] sm:$0xf]
  %v255 = vld [vmem:[%s1 + $0xc8] sm:$0xf]
  %v256 = vld [vmem:[%s1 + $0xcc] sm:$0xf]
  %v257 = vld [vmem:[%s1 + $0xd0] sm:$0xf]
  %v258 = vld [vmem:[%s1 + $0xd4] sm:$0xf]
  %v259 = vld [vmem:[%s1 + $0xd8] sm:$0xf]
  %v260 = vld [vmem:[%s1 + $0xdc] sm:$0xf]
  %v261 = vld [vmem:[%s1 + $0xe0] sm:$0xf]
  %v262 = vld [vmem:[%s1 + $0xe4] sm:$0xf]
  %v263 = vld [vmem:[%s1 + $0xe8] sm:$0xf]
  %v264 = vld [vmem:[%s1 + $0xec] sm:$0xf]
  %v265 = vld [vmem:[%s1 + $0xf0] sm:$0xf]
  %v266 = vld [vmem:[%s1 + $0xf4] sm:$0xf]
  %v267 = vld [vmem:[%s1 + $0xf8] sm:$0xf]
  %v268 = vld [vmem:[%s1 + $0xfc] sm:$0xf]
  %v269 = vld [vmem:[%s1 + $0x100] sm:$0xf]
  %v270 = vld [vmem:[%s1 + $0x104] sm:$0xf]
  %v271 = vld [vmem:[%s1 + $0x108] sm:$0xf]
  %v272 = vld [vmem:[%s1 + $0x10c] sm:$0xf]
  %v273 = vld [vmem:[%s1 + $0x110] sm:$0xf]
  %v274 = vld [vmem:[%s1 + $0x114] sm:$0xf]
  %v275 = vld [vmem:[%s1 + $0x118] sm:$0xf]
  %v276 = vld [vmem:[%s1 + $0x11c] sm:$0xf]
  %v277 = vld [vmem:[%s1 + $0x120] sm:$0xf]
  %v278 = vld [vmem:[%s1 + $0x124] sm:$0xf]
  %v279 = vld [vmem:[%s1 + $0x128] sm:$0xf]
  %v280 = vld [vmem:[%s1 + $0x12c] sm:$0xf]
  %v281 = vld [vmem:[%s1 + $0x130] sm:$0xf]
  %v282 = vld [vmem:[%s1 + $0x134] sm:$0xf]
  %v283 = vld [vmem:[%s1 + $0x138] sm:$0xf]
  %v284 = vld [vmem:[%s1 + $0x13c] sm:$0xf]
  %v285 = vld [vmem:[%s1 + $0x140] sm:$0xf]
  %v286 = vld [vmem:[%s1 + $0x144] sm:$0xf]
  %v287 = vld [vmem:[%s1 + $0x148] sm:$0xf]
  %v288 = vld [vmem:[%s1 + $0x14c] sm:$0xf]
  %v289 = vld [vmem:[%s1 + $0x150] sm:$0xf]
  %v290 = vld [vmem:[%s1 + $0x154] sm:$0xf]
  %v291 = vld [vmem:[%s1 + $0x158] sm:$0xf]
  %v292 = vld [vmem:[%s1 + $0x15c] sm:$0xf]
  %v293 = vld [vmem:[%s1 + $0x160] sm:$0xf]
  %v294 = vld [vmem:[%s1 + $0x164] sm:$0xf]
  %v295 = vld [vmem:[%s1 + $0x168] sm:$0xf]
  %v296 = vld [vmem:[%s1 + $0x16c] sm:$0xf]
  %v297 = vld [vmem:[%s1 + $0x170] sm:$0xf]
  %v298 = vld [vmem:[%s1 + $0x174] sm:$0xf]
  %v299 = vld [vmem:[%s1 + $0x178] sm:$0xf]
  %v300 = vld [vmem:[%s1 + $0x17c] sm:$0xf]
  %v301 = vpack.i.b16 %v192, %v191
  %v302 = vpack.i.b16 %v194, %v193
  %v303 = vpack.i.b16 %v196, %v195
  %v304 = vpack.i.b16 %v198, %v197
  %v305 = vpack.i.b16 %v200, %v199
  %v306 = vpack.i.b16 %v202, %v201
  %v307 = vpack.i.b16 %v204, %v203
  %309 = vst [vmem:[#allocation1] ss:$9 sm:$0xff] %v301
  %s311 = scalar_lea.vmem [#allocation1], 1
  %312 = vst [vmem:[%s311] ss:$9 sm:$0xff] %v302
  %s314 = scalar_lea.vmem [#allocation1], 2
  %315 = vst [vmem:[%s314] ss:$9 sm:$0xff] %v303
  %s317 = scalar_lea.vmem [#allocation1], 3
  %318 = vst [vmem:[%s317] ss:$9 sm:$0xff] %v304
  %s320 = scalar_lea.vmem [#allocation1], 4
  %321 = vst [vmem:[%s320] ss:$9 sm:$0xff] %v305
  %s323 = scalar_lea.vmem [#allocation1], 5
  %324 = vst [vmem:[%s323] ss:$9 sm:$0xff] %v306
  %s326 = scalar_lea.vmem [#allocation1], 6
  %327 = vst [vmem:[%s326] ss:$9 sm:$0xff] %v307
  %v328 = vld [vmem:[#allocation1] sm:$0xff]
  %v329 = vld [vmem:[#allocation1 + $0x9] sm:$0xff]
  %v330 = vld [vmem:[#allocation1 + $0x12] sm:$0xff]
  %v331 = vld [vmem:[#allocation1 + $0x1b] sm:$0xff]
  %v332 = vld [vmem:[#allocation1 + $0x24] sm:$0xff]
  %v333 = vld [vmem:[#allocation1 + $0x2d] sm:$0xff]
  %v436 = vunpack.c.l.b16 %v205
  %v437 = vunpack.c.l.b16 %v206
  %v438 = vunpack.c.l.b16 %v207
  %v439 = vunpack.c.l.b16 %v208
  %v440 = vunpack.c.l.b16 %v209
  %v441 = vunpack.c.l.b16 %v210
  %v442 = vunpack.c.l.b16 %v211
  %v443 = vunpack.c.l.b16 %v212
  %v444 = vunpack.c.l.b16 %v213
  %v445 = vunpack.c.l.b16 %v214
  %v446 = vunpack.c.l.b16 %v215
  %v447 = vunpack.c.l.b16 %v216
  %v448 = vunpack.c.l.b16 %v217
  %v449 = vunpack.c.l.b16 %v218
  %v450 = vunpack.c.l.b16 %v219
  %v451 = vunpack.c.l.b16 %v220
  %v452 = vunpack.c.l.b16 %v221
  %v453 = vunpack.c.l.b16 %v222
  %v454 = vunpack.c.l.b16 %v223
  %v455 = vunpack.c.l.b16 %v224
  %v456 = vunpack.c.l.b16 %v225
  %v457 = vunpack.c.l.b16 %v226
  %v458 = vunpack.c.l.b16 %v227
  %v459 = vunpack.c.l.b16 %v228
  %v460 = vunpack.c.l.b16 %v229
  %v461 = vunpack.c.l.b16 %v230
  %v462 = vunpack.c.l.b16 %v231
  %v463 = vunpack.c.l.b16 %v232
  %v464 = vunpack.c.l.b16 %v233
  %v465 = vunpack.c.l.b16 %v234
  %v466 = vunpack.c.l.b16 %v235
  %v467 = vunpack.c.l.b16 %v236
  %v468 = vunpack.c.l.b16 %v237
  %v469 = vunpack.c.l.b16 %v238
  %v470 = vunpack.c.l.b16 %v239
  %v471 = vunpack.c.l.b16 %v240
  %v472 = vunpack.c.l.b16 %v241
  %v473 = vunpack.c.l.b16 %v242
  %v474 = vunpack.c.l.b16 %v243
  %v475 = vunpack.c.l.b16 %v244
  %v476 = vunpack.c.l.b16 %v245
  %v477 = vunpack.c.l.b16 %v246
  %v478 = vunpack.c.l.b16 %v247
  %v479 = vunpack.c.l.b16 %v248
  %v480 = vunpack.c.l.b16 %v249
  %v481 = vunpack.c.l.b16 %v250
  %v482 = vunpack.c.l.b16 %v251
  %v483 = vunpack.c.l.b16 %v252
  %v484 = vunpack.c.l.b16 %v253
  %v485 = vunpack.c.l.b16 %v254
  %v486 = vunpack.c.l.b16 %v255
  %v487 = vunpack.c.l.b16 %v256
  %v488 = vunpack.c.l.b16 %v257
  %v489 = vunpack.c.l.b16 %v258
  %v490 = vunpack.c.l.b16 %v259
  %v491 = vunpack.c.l.b16 %v260
  %v492 = vunpack.c.l.b16 %v261
  %v493 = vunpack.c.l.b16 %v262
  %v494 = vunpack.c.l.b16 %v263
  %v495 = vunpack.c.l.b16 %v264
  %v496 = vunpack.c.l.b16 %v265
  %v497 = vunpack.c.l.b16 %v266
  %v498 = vunpack.c.l.b16 %v267
  %v499 = vunpack.c.l.b16 %v268
  %v500 = vunpack.c.l.b16 %v269
  %v501 = vunpack.c.l.b16 %v270
  %v502 = vunpack.c.l.b16 %v271
  %v503 = vunpack.c.l.b16 %v272
  %v504 = vunpack.c.l.b16 %v273
  %v505 = vunpack.c.l.b16 %v274
  %v506 = vunpack.c.l.b16 %v275
  %v507 = vunpack.c.l.b16 %v276
  %v508 = vunpack.c.l.b16 %v277
  %v509 = vunpack.c.l.b16 %v278
  %v510 = vunpack.c.l.b16 %v279
  %v511 = vunpack.c.l.b16 %v280
  %v512 = vunpack.c.l.b16 %v281
  %v513 = vunpack.c.l.b16 %v282
  %v514 = vunpack.c.l.b16 %v283
  %v515 = vunpack.c.l.b16 %v284
  %v516 = vunpack.c.l.b16 %v285
  %v517 = vunpack.c.l.b16 %v286
  %v518 = vunpack.c.l.b16 %v287
  %v519 = vunpack.c.l.b16 %v288
  %v520 = vunpack.c.l.b16 %v289
  %v521 = vunpack.c.l.b16 %v290
  %v522 = vunpack.c.l.b16 %v291
  %v523 = vunpack.c.l.b16 %v292
  %v524 = vunpack.c.l.b16 %v293
  %v525 = vunpack.c.l.b16 %v294
  %v526 = vunpack.c.l.b16 %v295
  %v527 = vunpack.c.l.b16 %v296
  %v528 = vunpack.c.l.b16 %v297
  %v529 = vunpack.c.l.b16 %v298
  %v530 = vunpack.c.l.b16 %v299
  %v531 = vunpack.c.l.b16 %v300
  %v532 = vpack.c.b16 %v437, %v436
  %v533 = vpack.c.b16 %v439, %v438
  %v534 = vpack.c.b16 %v441, %v440
  %v535 = vpack.c.b16 %v443, %v442
  %v536 = vpack.c.b16 %v445, %v444
  %v537 = vpack.c.b16 %v447, %v446
  %v538 = vpack.c.b16 %v449, %v448
  %v539 = vpack.c.b16 %v451, %v450
  %v540 = vpack.c.b16 %v453, %v452
  %v541 = vpack.c.b16 %v455, %v454
  %v542 = vpack.c.b16 %v457, %v456
  %v543 = vpack.c.b16 %v459, %v458
  %v544 = vpack.c.b16 %v461, %v460
  %v545 = vpack.c.b16 %v463, %v462
  %v546 = vpack.c.b16 %v465, %v464
  %v547 = vpack.c.b16 %v467, %v466
  %v548 = vpack.c.b16 %v469, %v468
  %v549 = vpack.c.b16 %v471, %v470
  %v550 = vpack.c.b16 %v473, %v472
  %v551 = vpack.c.b16 %v475, %v474
  %v552 = vpack.c.b16 %v477, %v476
  %v553 = vpack.c.b16 %v479, %v478
  %v554 = vpack.c.b16 %v481, %v480
  %v555 = vpack.c.b16 %v483, %v482
  %v556 = vpack.c.b16 %v485, %v484
  %v557 = vpack.c.b16 %v487, %v486
  %v558 = vpack.c.b16 %v489, %v488
  %v559 = vpack.c.b16 %v491, %v490
  %v560 = vpack.c.b16 %v493, %v492
  %v561 = vpack.c.b16 %v495, %v494
  %v562 = vpack.c.b16 %v497, %v496
  %v563 = vpack.c.b16 %v499, %v498
  %v564 = vpack.c.b16 %v501, %v500
  %v565 = vpack.c.b16 %v503, %v502
  %v566 = vpack.c.b16 %v505, %v504
  %v567 = vpack.c.b16 %v507, %v506
  %v568 = vpack.c.b16 %v509, %v508
  %v569 = vpack.c.b16 %v511, %v510
  %v570 = vpack.c.b16 %v513, %v512
  %v571 = vpack.c.b16 %v515, %v514
  %v572 = vpack.c.b16 %v517, %v516
  %v573 = vpack.c.b16 %v519, %v518
  %v574 = vpack.c.b16 %v521, %v520
  %v575 = vpack.c.b16 %v523, %v522
  %v576 = vpack.c.b16 %v525, %v524
  %v577 = vpack.c.b16 %v527, %v526
  %v578 = vpack.c.b16 %v529, %v528
  %v579 = vpack.c.b16 %v531, %v530
  %628 = vmatpush.bf16.msra.mxu0 %v539
  %629 = vmatpush.bf16.msra.mxu0 %v538
  %630 = vmatpush.bf16.msra.mxu0 %v537
  %631 = vmatpush.bf16.msra.mxu0 %v536
  %632 = vmatpush.bf16.msra.mxu0 %v535
  %633 = vmatpush.bf16.msra.mxu0 %v534
  %634 = vmatpush.bf16.msra.mxu0 %v533
  %635 = vmatpush.bf16.msra.mxu0 %v532
  %636 = vmatmul.bf16.gmra.mxu0 %v328
  %v637 = vpop.f32.mrf.mxu0
  %v638 = vadd.f32 0.0, %v637
  %v639 = vpop.f32.mrf.mxu0
  %v640 = vadd.f32 0.0, %v639
  %641 = vdwg.mxu0
  %642 = vmatpush.bf16.msra.mxu0 %v547
  %643 = vmatpush.bf16.msra.mxu0 %v546
  %644 = vmatpush.bf16.msra.mxu0 %v545
  %645 = vmatpush.bf16.msra.mxu0 %v544
  %646 = vmatpush.bf16.msra.mxu0 %v543
  %647 = vmatpush.bf16.msra.mxu0 %v542
  %648 = vmatpush.bf16.msra.mxu0 %v541
  %649 = vmatpush.bf16.msra.mxu0 %v540
  %650 = vmatmul.bf16.gmra.mxu0 %v329
  %v651 = vpop.f32.mrf.mxu0
  %v652 = vadd.f32 %v638, %v651
  %v653 = vpop.f32.mrf.mxu0
  %v654 = vadd.f32 %v640, %v653
  %655 = vdwg.mxu0
  %656 = vmatpush.bf16.msra.mxu0 %v555
  %657 = vmatpush.bf16.msra.mxu0 %v554
  %658 = vmatpush.bf16.msra.mxu0 %v553
  %659 = vmatpush.bf16.msra.mxu0 %v552
  %660 = vmatpush.bf16.msra.mxu0 %v551
  %661 = vmatpush.bf16.msra.mxu0 %v550
  %662 = vmatpush.bf16.msra.mxu0 %v549
  %663 = vmatpush.bf16.msra.mxu0 %v548
  %664 = vmatmul.bf16.gmra.mxu0 %v330
  %v665 = vpop.f32.mrf.mxu0
  %v666 = vadd.f32 %v652, %v665
  %v667 = vpop.f32.mrf.mxu0
  %v668 = vadd.f32 %v654, %v667
  %669 = vdwg.mxu0
  %670 = vmatpush.bf16.msra.mxu0 %v563
  %671 = vmatpush.bf16.msra.mxu0 %v562
  %672 = vmatpush.bf16.msra.mxu0 %v561
  %673 = vmatpush.bf16.msra.mxu0 %v560
  %674 = vmatpush.bf16.msra.mxu0 %v559
  %675 = vmatpush.bf16.msra.mxu0 %v558
  %676 = vmatpush.bf16.msra.mxu0 %v557
  %677 = vmatpush.bf16.msra.mxu0 %v556
  %678 = vmatmul.bf16.gmra.mxu0 %v331
  %v679 = vpop.f32.mrf.mxu0
  %v680 = vadd.f32 %v666, %v679
  %v681 = vpop.f32.mrf.mxu0
  %v682 = vadd.f32 %v668, %v681
  %683 = vdwg.mxu0
  %684 = vmatpush.bf16.msra.mxu0 %v571
  %685 = vmatpush.bf16.msra.mxu0 %v570
  %686 = vmatpush.bf16.msra.mxu0 %v569
  %687 = vmatpush.bf16.msra.mxu0 %v568
  %688 = vmatpush.bf16.msra.mxu0 %v567
  %689 = vmatpush.bf16.msra.mxu0 %v566
  %690 = vmatpush.bf16.msra.mxu0 %v565
  %691 = vmatpush.bf16.msra.mxu0 %v564
  %692 = vmatmul.bf16.gmra.mxu0 %v332
  %v693 = vpop.f32.mrf.mxu0
  %v694 = vadd.f32 %v680, %v693
  %v695 = vpop.f32.mrf.mxu0
  %v696 = vadd.f32 %v682, %v695
  %697 = vdwg.mxu0
  %698 = vmatpush.bf16.msra.mxu0 %v579
  %699 = vmatpush.bf16.msra.mxu0 %v578
  %700 = vmatpush.bf16.msra.mxu0 %v577
  %701 = vmatpush.bf16.msra.mxu0 %v576
  %702 = vmatpush.bf16.msra.mxu0 %v575
  %703 = vmatpush.bf16.msra.mxu0 %v574
  %704 = vmatpush.bf16.msra.mxu0 %v573
  %705 = vmatpush.bf16.msra.mxu0 %v572
  %706 = vmatmul.bf16.gmra.mxu0 %v333
  %v707 = vpop.f32.mrf.mxu0
  %v708 = vadd.f32 %v694, %v707
  %v709 = vpop.f32.mrf.mxu0
  %v710 = vadd.f32 %v696, %v709
  %711 = vdwg.mxu0
  %v712 = vld [vmem:[%s3] sm:$0x7f]
  %v713 = vld [vmem:[%s3 + $0x8] sm:$0x7f]
  %v716 = vrot.slane %v708, 1
  %v717 = vrot.slane %v708, 2
  %v718 = vrot.slane %v708, 3
  %v719 = vrot.slane %v708, 4
  %v720 = vrot.slane %v708, 5
  %v721 = vrot.slane %v708, 6
  %v722 = vrot.slane %v708, 7
  %v723 = vrot.slane %v710, 1
  %v724 = vrot.slane %v710, 2
  %v725 = vrot.slane %v710, 3
  %v726 = vrot.slane %v710, 4
  %v727 = vrot.slane %v710, 5
  %728 = vst [vmem:[#allocation1] ss:$9 sm:$0xff] %v708
  %s729 = scalar_lea.vmem [#allocation1], 1
  %730 = vst [vmem:[%s729] ss:$9 sm:$0xff] %v716
  %s731 = scalar_lea.vmem [#allocation1], 2
  %732 = vst [vmem:[%s731] ss:$9 sm:$0xff] %v717
  %s733 = scalar_lea.vmem [#allocation1], 3
  %734 = vst [vmem:[%s733] ss:$9 sm:$0xff] %v718
  %s735 = scalar_lea.vmem [#allocation1], 4
  %736 = vst [vmem:[%s735] ss:$9 sm:$0xff] %v719
  %s737 = scalar_lea.vmem [#allocation1], 5
  %738 = vst [vmem:[%s737] ss:$9 sm:$0xff] %v720
  %s739 = scalar_lea.vmem [#allocation1], 6
  %740 = vst [vmem:[%s739] ss:$9 sm:$0xff] %v721
  %v741 = vld [vmem:[#allocation1] sm:$0xff]
  %742 = vst [vmem:[#allocation1] ss:$9 sm:$0xff] %v722
  %743 = vst [vmem:[%s729] ss:$9 sm:$0xff] %v710
  %744 = vst [vmem:[%s731] ss:$9 sm:$0xff] %v723
  %745 = vst [vmem:[%s733] ss:$9 sm:$0xff] %v724
  %746 = vst [vmem:[%s735] ss:$9 sm:$0xff] %v725
  %747 = vst [vmem:[%s737] ss:$9 sm:$0xff] %v726
  %748 = vst [vmem:[%s739] ss:$9 sm:$0xff] %v727
  %v749 = vld [vmem:[#allocation1] sm:$0xff]
  %v752 = vadd.f32 %v712, %v741
  %v753 = vadd.f32 %v713, %v749
  %754 = vst [vmem:[%s3] sm:$0x7f] %v752
  %755 = vst [vmem:[%s3 + $0x8] sm:$0x7f] %v753
  // Predicated region
  $region18: #{video_transformer_motion_forward.2} parent=0 // pred_check
    _
  $region19: #{video_transformer_motion_forward.2} parent=0 // pred_check_branch
    %757 = sbr.rel (0) target = $region21
  $region20: #{video_transformer_motion_forward.2} parent=0 // pred_region
    _
  $region21: #{video_transformer_motion_forward.2} parent=0 // pred_fallthru
    _
  // Predicated region
  $region22: #{video_transformer_motion_forward.2} parent=0 // pred_check
    _
  $region23: #{video_transformer_motion_forward.2} parent=0 // pred_check_branch
    %759 = sbr.rel (0) target = $region25
  $region24: #{video_transformer_motion_forward.2} parent=0 // pred_region
    _
  $region25: #{video_transformer_motion_forward.2} parent=0 // pred_fallthru
    _

// kernel: video_transformer_motion_forward.3
$region0: #{video_transformer_motion_forward.3}
  #allocation0 [shape = 'u32[]', space=smem, size = 0x4, offset = 0x4, fixed_abs, tag = 'smem constant byte address 0x4 - core index']
  #allocation1 [shape = 'u32[72,128]{1,0:T(1,128)}', space=vmem, size = 0x9000, scoped, tag = 'internal scratch']
  %s0 = inlined_call_operand.vmem [shape: f32[2,7,128], index: 0, kind: input, shape index: {}]
  %s1 = inlined_call_operand.vmem [shape: bf16[128,384], index: 1, kind: input, shape index: {}]
  %s2 = inlined_call_operand.vmem [shape: bf16[128,128], index: 2, kind: input, shape index: {}]
  %s3 = inlined_call_operand.vmem [shape: f32[1,128], index: 3, kind: input, shape index: {}]
  %s4 = inlined_call_operand.vmem [shape: f32[1,128], index: 4, kind: input, shape index: {}]
  %s5 = inlined_call_operand.vmem [shape: bf16[128,128], index: 5, kind: input, shape index: {}]
  %s6 = inlined_call_operand.vmem [shape: f32[1,128], index: 6, kind: input, shape index: {}]
  %s7 = inlined_call_operand.hbm [shape: f32[2,128], index: 7, kind: output, shape index: {}]
  %s8 = sld [smem:[#allocation0]]
  $region38: #{video_transformer_motion_forward.3} parent=0
    _
  %s10 = ssub.s32 1, %s8
  %s11 = scalar_select 0, %s10, %s8
  $region1: #{video_transformer_motion_forward.3} parent=0
    #allocation2 [shape = 'u8[1024]{0}', space=vmem, size = 0x400, scoped, tag = 'output window, operand 0, single buffered']
    #allocation3 [shape = 's32[1]{0}', space=sflag, size = 0x4, scoped, tag = 'scoped memory for video_transformer_motion_forward.3']
    %12 = vsyncpa [#allocation3], 0
    // Predicated region
    $region2: #{video_transformer_motion_forward.3} parent=1 // pred_check
      _
    $region3: #{video_transformer_motion_forward.3} parent=1 // pred_check_branch
      %14 = sbr.rel (0) target = $region5
    $region4: #{video_transformer_motion_forward.3} parent=1 // pred_region
      _
    $region5: #{video_transformer_motion_forward.3} parent=1 // pred_fallthru
      _
    // Predicated region
    $region6: #{video_transformer_motion_forward.3} parent=1 // pred_check
      _
    $region7: #{video_transformer_motion_forward.3} parent=1 // pred_check_branch
      %16 = sbr.rel (0) target = $region9
    $region8: #{video_transformer_motion_forward.3} parent=1 // pred_region
      _
    $region9: #{video_transformer_motion_forward.3} parent=1 // pred_fallthru
      _
    // Predicated region
    $region10: #{video_transformer_motion_forward.3} parent=1 // pred_check
      _
    $region11: #{video_transformer_motion_forward.3} parent=1 // pred_check_branch
      %18 = sbr.rel (0) target = $region13
    $region12: #{video_transformer_motion_forward.3} parent=1 // pred_region
      _
    $region13: #{video_transformer_motion_forward.3} parent=1 // pred_fallthru
      _
    // Predicated region
    $region14: #{video_transformer_motion_forward.3} parent=1 // pred_check
      _
    $region15: #{video_transformer_motion_forward.3} parent=1 // pred_check_branch
      %20 = sbr.rel (0) target = $region17
    $region16: #{video_transformer_motion_forward.3} parent=1 // pred_region
      _
    $region17: #{video_transformer_motion_forward.3} parent=1 // pred_fallthru
      _
    // Predicated region
    $region18: #{video_transformer_motion_forward.3} parent=1 // pred_check
      _
    $region19: #{video_transformer_motion_forward.3} parent=1 // pred_check_branch
      %22 = sbr.rel (0) target = $region21
    $region20: #{video_transformer_motion_forward.3} parent=1 // pred_region
      _
    $region21: #{video_transformer_motion_forward.3} parent=1 // pred_fallthru
      _
    // Predicated region
    $region22: #{video_transformer_motion_forward.3} parent=1 // pred_check
      _
    $region23: #{video_transformer_motion_forward.3} parent=1 // pred_check_branch
      %24 = sbr.rel (0) target = $region25
    $region24: #{video_transformer_motion_forward.3} parent=1 // pred_region
      _
    $region25: #{video_transformer_motion_forward.3} parent=1 // pred_fallthru
      _
    // Predicated region
    $region26: #{video_transformer_motion_forward.3} parent=1 // pred_check
      _
    $region27: #{video_transformer_motion_forward.3} parent=1 // pred_check_branch
      %26 = sbr.rel (0) target = $region29
    $region28: #{video_transformer_motion_forward.3} parent=1 // pred_region
      _
    $region29: #{video_transformer_motion_forward.3} parent=1 // pred_fallthru
      _
    %v28 = vld [vmem:[%s0] sm:$0x7f]
    %v29 = vld [vmem:[%s0 + $0x8] sm:$0x7f]
    %vm30 = vcmask 1046528
    %v31 = vsel %vm30, %v28, 0.0
    %32 = vadd.xlane.f32.xlu0 %v31
    %v33 = vpop.xlane.xlu0 %32
    %v34 = vsel %vm30, %v29, 0.0
    %35 = vadd.xlane.f32.xlu0 %v34
    %v36 = vpop.xlane.xlu0 %35
    %v37 = vrcp.pop 128.0
    %v38 = vmul.f32 128.0, %v37
    %v39 = vsub.f32 1.0, %v38
    %v40 = vmul.f32 %v37, %v39
    %v41 = vadd.f32 %v37, %v40
    %vm42 = vweird.f32 %v37
    %v43 = vsel %vm42, %v37, %v41
    %v44 = vmul.f32 %v33, %v43
    %v45 = vmul.f32 %v36, %v43
    %v46 = vsub.f32 %v28, %v44
    %v47 = vsub.f32 %v29, %v45
    %v48 = vmul.f32 %v46, %v46
    %v49 = vmul.f32 %v47, %v47
    %v50 = vsel %vm30, %v48, 0.0
    %51 = vadd.xlane.f32.xlu0 %v50
    %v52 = vpop.xlane.xlu0 %51
    %v53 = vsel %vm30, %v49, 0.0
    %54 = vadd.xlane.f32.xlu0 %v53
    %v55 = vpop.xlane.xlu0 %54
    %v56 = vmul.f32 %v52, %v43
    %v57 = vmul.f32 %v55, %v43
    %v58 = vadd.f32 %v56, 1e-05
    %v59 = vadd.f32 %v57, 1e-05
    %v60 = vrsqrt.pop %v58
    %v61 = vmul.f32 %v60, %v58
    %v62 = vmul.f32 %v61, %v60
    %v63 = vmul.f32 0.5, %v62
    %v64 = vsub.f32 1.5, %v63
    %v65 = vmul.f32 %v60, %v64
    %vm66 = vweird.f32 %v58
    %vm67 = vweird.f32 %v60
    %vm68 = vmor %vm66, %vm67
    %v69 = vsel %vm68, %v60, %v65
    %v70 = vrsqrt.pop %v59
    %v71 = vmul.f32 %v70, %v59
    %v72 = vmul.f32 %v71, %v70
    %v73 = vmul.f32 0.5, %v72
    %v74 = vsub.f32 1.5, %v73
    %v75 = vmul.f32 %v70, %v74
    %vm76 = vweird.f32 %v59
    %vm77 = vweird.f32 %v70
    %vm78 = vmor %vm76, %vm77
    %v79 = vsel %vm78, %v70, %v75
    %v80 = vmul.f32 %v46, %v69
    %v81 = vmul.f32 %v47, %v79
    %v82 = vld [vmem:[%s3] sm:$0x1]
    %v84 = vperm.slane %v82, 0
    %v86 = vmul.f32 %v80, %v84
    %v87 = vmul.f32 %v81, %v84
    %v88 = vld [vmem:[%s4] sm:$0x1]
    %v90 = vperm.slane %v88, 0
    %v92 = vadd.f32 %v86, %v90
    %v93 = vadd.f32 %v87, %v90
    %v96 = vrot.slane %v92, 1
    %v97 = vrot.slane %v92, 2
    %v98 = vrot.slane %v92, 3
    %v99 = vrot.slane %v92, 4
    %v100 = vrot.slane %v92, 5
    %v101 = vrot.slane %v92, 6
    %v102 = vrot.slane %v93, 1
    %v103 = vrot.slane %v93, 2
    %v104 = vrot.slane %v93, 3
    %v105 = vrot.slane %v93, 4
    %v106 = vrot.slane %v93, 5
    %v107 = vrot.slane %v93, 6
    %108 = vst [vmem:[#allocation1] ss:$9 sm:$0xff] %v92
    %s109 = scalar_lea.vmem [#allocation1], 1
    %110 = vst [vmem:[%s109] ss:$9 sm:$0xff] %v96
    %s111 = scalar_lea.vmem [#allocation1], 2
    %112 = vst [vmem:[%s111] ss:$9 sm:$0xff] %v97
    %s113 = scalar_lea.vmem [#allocation1], 3
    %114 = vst [vmem:[%s113] ss:$9 sm:$0xff] %v98
    %s115 = scalar_lea.vmem [#allocation1], 4
    %116 = vst [vmem:[%s115] ss:$9 sm:$0xff] %v99
    %s117 = scalar_lea.vmem [#allocation1], 5
    %118 = vst [vmem:[%s117] ss:$9 sm:$0xff] %v100
    %s119 = scalar_lea.vmem [#allocation1], 6
    %120 = vst [vmem:[%s119] ss:$9 sm:$0xff] %v101
    %s121 = scalar_lea.vmem [#allocation1], 7
    %122 = vst [vmem:[%s121] ss:$9 sm:$0xff] %v93
    %v123 = vld [vmem:[#allocation1] sm:$0xff]
    %124 = vst [vmem:[#allocation1] ss:$9 sm:$0xff] %v102
    %125 = vst [vmem:[%s109] ss:$9 sm:$0xff] %v103
    %126 = vst [vmem:[%s111] ss:$9 sm:$0xff] %v104
    %127 = vst [vmem:[%s113] ss:$9 sm:$0xff] %v105
    %128 = vst [vmem:[%s115] ss:$9 sm:$0xff] %v106
    %129 = vst [vmem:[%s117] ss:$9 sm:$0xff] %v107
    %v130 = vld [vmem:[#allocation1] sm:$0xff]
    %v133 = vpack.c.bf16 %v130, %v123
    %v134 = vld [vmem:[%s1] sm:$0xff]
    %v135 = vld [vmem:[%s1 + $0x8] sm:$0xf]
    %v136 = vld [vmem:[%s1 + $0xc] sm:$0xff]
    %v137 = vld [vmem:[%s1 + $0x14] sm:$0xf]
    %v138 = vld [vmem:[%s1 + $0x18] sm:$0xff]
    %v139 = vld [vmem:[%s1 + $0x20] sm:$0xf]
    %v140 = vld [vmem:[%s1 + $0x24] sm:$0xff]
    %v141 = vld [vmem:[%s1 + $0x2c] sm:$0xf]
    %v142 = vld [vmem:[%s1 + $0x30] sm:$0xff]
    %v143 = vld [vmem:[%s1 + $0x38] sm:$0xf]
    %v144 = vld [vmem:[%s1 + $0x3c] sm:$0xff]
    %v145 = vld [vmem:[%s1 + $0x44] sm:$0xf]
    %v146 = vld [vmem:[%s1 + $0x48] sm:$0xff]
    %v147 = vld [vmem:[%s1 + $0x50] sm:$0xf]
    %v148 = vld [vmem:[%s1 + $0x54] sm:$0xff]
    %v149 = vld [vmem:[%s1 + $0x5c] sm:$0xf]
    %v150 = vld [vmem:[%s1 + $0x60] sm:$0xff]
    %v151 = vld [vmem:[%s1 + $0x68] sm:$0xf]
    %v152 = vld [vmem:[%s1 + $0x6c] sm:$0xff]
    %v153 = vld [vmem:[%s1 + $0x74] sm:$0xf]
    %v154 = vld [vmem:[%s1 + $0x78] sm:$0xff]
    %v155 = vld [vmem:[%s1 + $0x80] sm:$0xf]
    %v156 = vld [vmem:[%s1 + $0x84] sm:$0xff]
    %v157 = vld [vmem:[%s1 + $0x8c] sm:$0xf]
    %v158 = vld [vmem:[%s1 + $0x90] sm:$0xff]
    %v159 = vld [vmem:[%s1 + $0x98] sm:$0xf]
    %v160 = vld [vmem:[%s1 + $0x9c] sm:$0xff]
    %v161 = vld [vmem:[%s1 + $0xa4] sm:$0xf]
    %v162 = vld [vmem:[%s1 + $0xa8] sm:$0xff]
    %v163 = vld [vmem:[%s1 + $0xb0] sm:$0xf]
    %v164 = vld [vmem:[%s1 + $0xb4] sm:$0xff]
    %v165 = vld [vmem:[%s1 + $0xbc] sm:$0xf]
    %v198 = vunpack.c.l.b16 %v134
    %v199 = vunpack.c.h.b16 %v134
    %v200 = vunpack.c.l.b16 %v135
    %v201 = vunpack.c.l.b16 %v136
    %v202 = vunpack.c.h.b16 %v136
    %v203 = vunpack.c.l.b16 %v137
    %v204 = vunpack.c.l.b16 %v138
    %v205 = vunpack.c.h.b16 %v138
    %v206 = vunpack.c.l.b16 %v139
    %v207 = vunpack.c.l.b16 %v140
    %v208 = vunpack.c.h.b16 %v140
    %v209 = vunpack.c.l.b16 %v141
    %v210 = vunpack.c.l.b16 %v142
    %v211 = vunpack.c.h.b16 %v142
    %v212 = vunpack.c.l.b16 %v143
    %v213 = vunpack.c.l.b16 %v144
    %v214 = vunpack.c.h.b16 %v144
    %v215 = vunpack.c.l.b16 %v145
    %v216 = vunpack.c.l.b16 %v146
    %v217 = vunpack.c.h.b16 %v146
    %v218 = vunpack.c.l.b16 %v147
    %v219 = vunpack.c.l.b16 %v148
    %v220 = vunpack.c.h.b16 %v148
    %v221 = vunpack.c.l.b16 %v149
    %v222 = vunpack.c.l.b16 %v150
    %v223 = vunpack.c.h.b16 %v150
    %v224 = vunpack.c.l.b16 %v151
    %v225 = vunpack.c.l.b16 %v152
    %v226 = vunpack.c.h.b16 %v152
    %v227 = vunpack.c.l.b16 %v153
    %v228 = vunpack.c.l.b16 %v154
    %v229 = vunpack.c.h.b16 %v154
    %v230 = vunpack.c.l.b16 %v155
    %v231 = vunpack.c.l.b16 %v156
    %v232 = vunpack.c.h.b16 %v156
    %v233 = vunpack.c.l.b16 %v157
    %v234 = vunpack.c.l.b16 %v158
    %v235 = vunpack.c.h.b16 %v158
    %v236 = vunpack.c.l.b16 %v159
    %v237 = vunpack.c.l.b16 %v160
    %v238 = vunpack.c.h.b16 %v160
    %v239 = vunpack.c.l.b16 %v161
    %v240 = vunpack.c.l.b16 %v162
    %v241 = vunpack.c.h.b16 %v162
    %v242 = vunpack.c.l.b16 %v163
    %v243 = vunpack.c.l.b16 %v164
    %v244 = vunpack.c.h.b16 %v164
    %v245 = vunpack.c.l.b16 %v165
    %v246 = vpack.c.b16 %v201, %v198
    %v247 = vpack.c.b16 %v202, %v199
    %v248 = vpack.c.b16 %v203, %v200
    %v249 = vpack.c.b16 %v207, %v204
    %v250 = vpack.c.b16 %v208, %v205
    %v251 = vpack.c.b16 %v209, %v206
    %v252 = vpack.c.b16 %v213, %v210
    %v253 = vpack.c.b16 %v214, %v211
    %v254 = vpack.c.b16 %v215, %v212
    %v255 = vpack.c.b16 %v219, %v216
    %v256 = vpack.c.b16 %v220, %v217
    %v257 = vpack.c.b16 %v221, %v218
    %v258 = vpack.c.b16 %v225, %v222
    %v259 = vpack.c.b16 %v226, %v223
    %v260 = vpack.c.b16 %v227, %v224
    %v261 = vpack.c.b16 %v231, %v228
    %v262 = vpack.c.b16 %v232, %v229
    %v263 = vpack.c.b16 %v233, %v230
    %v264 = vpack.c.b16 %v237, %v234
    %v265 = vpack.c.b16 %v238, %v235
    %v266 = vpack.c.b16 %v239, %v236
    %v267 = vpack.c.b16 %v243, %v240
    %v268 = vpack.c.b16 %v244, %v241
    %v269 = vpack.c.b16 %v245, %v242
    %294 = vmatpush.bf16.msra.mxu0 %v267
    %295 = vmatpush.bf16.msra.mxu0 %v264
    %296 = vmatpush.bf16.msra.mxu0 %v261
    %297 = vmatpush.bf16.msra.mxu0 %v258
    %298 = vmatpush.bf16.msra.mxu0 %v255
    %299 = vmatpush.bf16.msra.mxu0 %v252
    %300 = vmatpush.bf16.msra.mxu0 %v249
    %301 = vmatpush.bf16.msra.mxu0 %v246
    %302 = vmatmul.bf16.gmra.mxu0 %v133
    %v303 = vpop.f32.mrf.mxu0
    %v304 = vadd.f32 0.0, %v303
    %v305 = vpop.f32.mrf.mxu0
    %v306 = vadd.f32 0.0, %v305
    %307 = vdwg.mxu0
    %308 = vmatpush.bf16.msra.mxu0 %v268
    %309 = vmatpush.bf16.msra.mxu0 %v265
    %310 = vmatpush.bf16.msra.mxu0 %v262
    %311 = vmatpush.bf16.msra.mxu0 %v259
    %312 = vmatpush.bf16.msra.mxu0 %v256
    %313 = vmatpush.bf16.msra.mxu0 %v253
    %314 = vmatpush.bf16.msra.mxu0 %v250
    %315 = vmatpush.bf16.msra.mxu0 %v247
    %316 = vmatmul.bf16.gmra.mxu0 %v133
    %v317 = vpop.f32.mrf.mxu0
    %v318 = vadd.f32 0.0, %v317
    %v319 = vpop.f32.mrf.mxu0
    %v320 = vadd.f32 0.0, %v319
    %321 = vdwg.mxu0
    %322 = vmatpush.bf16.msra.mxu0 %v269
    %323 = vmatpush.bf16.msra.mxu0 %v266
    %324 = vmatpush.bf16.msra.mxu0 %v263
    %325 = vmatpush.bf16.msra.mxu0 %v260
    %326 = vmatpush.bf16.msra.mxu0 %v257
    %327 = vmatpush.bf16.msra.mxu0 %v254
    %328 = vmatpush.bf16.msra.mxu0 %v251
    %329 = vmatpush.bf16.msra.mxu0 %v248
    %330 = vmatmul.bf16.gmra.mxu0 %v133
    %v331 = vpop.f32.mrf.mxu0
    %v332 = vadd.f32 0.0, %v331
    %v333 = vpop.f32.mrf.mxu0
    %v334 = vadd.f32 0.0, %v333
    %335 = vdwg.mxu0
    %v342 = vrot.slane %v318, 7
    %v343 = vrot.slane %v332, 6
    %v344 = vrot.slane %v320, 7
    %v345 = vrot.slane %v334, 6
    %vm346 = vcmask 1040384
    %v347 = vsel %vm346, %v304, %v342
    %vm348 = vcmask 1041408
    %v349 = vsel %vm348, %v347, %v343
    %vm350 = vcmask 1041409
    %v351 = vsel %vm350, %v304, %v342
    %vm352 = vcmask 1042433
    %v353 = vsel %vm352, %v351, %v343
    %v354 = vrot.slane %v353, 1
    %vm355 = vcmask 1042434
    %v356 = vsel %vm355, %v304, %v342
    %vm357 = vcmask 1043458
    %v358 = vsel %vm357, %v356, %v343
    %v359 = vrot.slane %v358, 2
    %vm360 = vcmask 1043459
    %v361 = vsel %vm360, %v304, %v342
    %vm362 = vcmask 1044483
    %v363 = vsel %vm362, %v361, %v343
    %v364 = vrot.slane %v363, 3
    %vm365 = vcmask 1044484
    %v366 = vsel %vm365, %v304, %v342
    %vm367 = vcmask 1045508
    %v368 = vsel %vm367, %v366, %v343
    %v369 = vrot.slane %v368, 4
    %vm370 = vcmask 1045509
    %v371 = vsel %vm370, %v304, %v342
    %vm372 = vcmask 1046533
    %v373 = vsel %vm372, %v371, %v343
    %v374 = vrot.slane %v373, 5
    %vm375 = vcmask 1046534
    %v376 = vsel %vm375, %v304, %v342
    %vm377 = vcmask 1045504
    %v378 = vsel %vm377, %v343, %v376
    %v379 = vrot.slane %v378, 6
    %v380 = vsel %vm30, %v342, %v304
    %vm381 = vcmask 1046529
    %v382 = vsel %vm381, %v343, %v380
    %v383 = vrot.slane %v382, 7
    %v384 = vsel %vm346, %v306, %v344
    %v385 = vsel %vm348, %v384, %v345
    %v386 = vsel %vm350, %v306, %v344
    %v387 = vsel %vm352, %v386, %v345
    %v388 = vrot.slane %v387, 1
    %v389 = vsel %vm355, %v306, %v344
    %v390 = vsel %vm357, %v389, %v345
    %v391 = vrot.slane %v390, 2
    %v392 = vsel %vm360, %v306, %v344
    %v393 = vsel %vm362, %v392, %v345
    %v394 = vrot.slane %v393, 3
    %v395 = vsel %vm365, %v306, %v344
    %v396 = vsel %vm367, %v395, %v345
    %v397 = vrot.slane %v396, 4
    %v398 = vsel %vm370, %v306, %v344
    %v399 = vsel %vm372, %v398, %v345
    %v400 = vrot.slane %v399, 5
    %401 = vst [vmem:[#allocation1] ss:$9 sm:$0xff] %v349
    %s402 = scalar_lea.vmem [#allocation1], 1
    %403 = vst [vmem:[%s402] ss:$9 sm:$0xff] %v354
    %s404 = scalar_lea.vmem [#allocation1], 2
    %405 = vst [vmem:[%s404] ss:$9 sm:$0xff] %v359
    %s406 = scalar_lea.vmem [#allocation1], 3
    %407 = vst [vmem:[%s406] ss:$9 sm:$0xff] %v364
    %s408 = scalar_lea.vmem [#allocation1], 4
    %409 = vst [vmem:[%s408] ss:$9 sm:$0xff] %v369
    %s410 = scalar_lea.vmem [#allocation1], 5
    %411 = vst [vmem:[%s410] ss:$9 sm:$0xff] %v374
    %s412 = scalar_lea.vmem [#allocation1], 6
    %413 = vst [vmem:[%s412] ss:$9 sm:$0xff] %v379
    %v414 = vld [vmem:[#allocation1] sm:$0xff]
    %415 = vst [vmem:[#allocation1] ss:$9 sm:$0xff] %v383
    %416 = vst [vmem:[%s402] ss:$9 sm:$0xff] %v385
    %417 = vst [vmem:[%s404] ss:$9 sm:$0xff] %v388
    %418 = vst [vmem:[%s406] ss:$9 sm:$0xff] %v391
    %419 = vst [vmem:[%s408] ss:$9 sm:$0xff] %v394
    %420 = vst [vmem:[%s410] ss:$9 sm:$0xff] %v397
    %421 = vst [vmem:[%s412] ss:$9 sm:$0xff] %v400
    %v422 = vld [vmem:[#allocation1] sm:$0xff]
    %v425 = vpack.c.bf16 %v414, %v414
    %v426 = vpack.c.bf16 %v422, %v422
    %427 = vst [vmem:[#allocation1] ss:$9 sm:$0xff] %v349
    %s428 = scalar_lea.vmem [#allocation1], 1
    %429 = vst [vmem:[%s428] ss:$9 sm:$0xff] %v354
    %s430 = scalar_lea.vmem [#allocation1], 2
    %431 = vst [vmem:[%s430] ss:$9 sm:$0xff] %v359
    %s432 = scalar_lea.vmem [#allocation1], 3
    %433 = vst [vmem:[%s432] ss:$9 sm:$0xff] %v364
    %s434 = scalar_lea.vmem [#allocation1], 4
    %435 = vst [vmem:[%s434] ss:$9 sm:$0xff] %v369
    %s436 = scalar_lea.vmem [#allocation1], 5
    %437 = vst [vmem:[%s436] ss:$9 sm:$0xff] %v374
    %s438 = scalar_lea.vmem [#allocation1], 6
    %439 = vst [vmem:[%s438] ss:$9 sm:$0xff] %v379
    %v440 = vld [vmem:[#allocation1 + $0x9] sm:$0xff]
    %441 = vst [vmem:[#allocation1] ss:$9 sm:$0xff] %v383
    %442 = vst [vmem:[%s428] ss:$9 sm:$0xff] %v385
    %443 = vst [vmem:[%s430] ss:$9 sm:$0xff] %v388
    %444 = vst [vmem:[%s432] ss:$9 sm:$0xff] %v391
    %445 = vst [vmem:[%s434] ss:$9 sm:$0xff] %v394
    %446 = vst [vmem:[%s436] ss:$9 sm:$0xff] %v397
    %447 = vst [vmem:[%s438] ss:$9 sm:$0xff] %v400
    %v448 = vld [vmem:[#allocation1 + $0x9] sm:$0xff]
    %v451 = vpack.c.bf16 %v440, %v440
    %v452 = vpack.c.bf16 %v448, %v448
    %453 = vmatpush.bf16.xpose.msra.mxu0 0
    %454 = vmatpush.bf16.xpose.msra.mxu0 0
    %455 = vmatpush.bf16.xpose.msra.mxu0 0
    %456 = vmatpush.bf16.xpose.msra.mxu0 0
    %457 = vmatpush.bf16.xpose.msra.mxu0 0
    %458 = vmatpush.bf16.xpose.msra.mxu0 0
    %459 = vmatpush.bf16.xpose.msra.mxu0 0
    %460 = vmatpush.bf16.xpose.msra.mxu0 %v451
    %461 = vmatmul.bf16.gmra.mxu0 %v425
    %v462 = vpop.f32.mrf.mxu0
    %v463 = vadd.f32 0.0, %v462
    %v464 = vpop.f32.mrf.mxu0
    %465 = vdwg.mxu0
    %466 = vmatpush.bf16.xpose.msra.mxu0 0
    %467 = vmatpush.bf16.xpose.msra.mxu0 0
    %468 = vmatpush.bf16.xpose.msra.mxu0 0
    %469 = vmatpush.bf16.xpose.msra.mxu0 0
    %470 = vmatpush.bf16.xpose.msra.mxu0 0
    %471 = vmatpush.bf16.xpose.msra.mxu0 0
    %472 = vmatpush.bf16.xpose.msra.mxu0 0
    %473 = vmatpush.bf16.xpose.msra.mxu0 %v452
    %474 = vmatmul.bf16.gmra.mxu0 %v426
    %v475 = vpop.f32.mrf.mxu0
    %v476 = vadd.f32 0.0, %v475
    %v477 = vpop.f32.mrf.mxu0
    %478 = vdwg.mxu0
    %v479 = vmul.f32 %v463, 0.088388346
    %v480 = vmul.f32 %v476, 0.088388346
    %vm481 = vcmask 55296
    %v482 = vsel %vm481, %v479, -inf
    %483 = vmax.xlane.f32.xlu0 %v482
    %v484 = vpop.xlane.xlu0 %483
    %v485 = vsel %vm481, %v480, -inf
    %486 = vmax.xlane.f32.xlu0 %v485
    %v487 = vpop.xlane.xlu0 %486
    %v488 = vsub.f32 %v479, %v484
    %v489 = vsub.f32 %v480, %v487
    %v490 = vmul.f32 %v488, 1.442695
    %v491 = vpow.pop %v490
    %v492 = vmul.f32 %v489, 1.442695
    %v493 = vpow.pop %v492
    %v494 = vsel %vm481, %v491, 0.0
    %495 = vadd.xlane.f32.xlu0 %v494
    %v496 = vpop.xlane.xlu0 %495
    %v497 = vsel %vm481, %v493, 0.0
    %498 = vadd.xlane.f32.xlu0 %v497
    %v499 = vpop.xlane.xlu0 %498
    %v500 = vrcp.pop %v496
    %v501 = vrcp.pop %v499
    %v502 = vmul.f32 %v491, %v500
    %v503 = vmul.f32 %v493, %v501
    %v504 = vpack.c.bf16 %v502, %v502
    %v505 = vpack.c.bf16 %v503, %v503
    %506 = vst [vmem:[#allocation1] ss:$9 sm:$0xff] %v349
    %s507 = scalar_lea.vmem [#allocation1], 1
    %508 = vst [vmem:[%s507] ss:$9 sm:$0xff] %v354
    %s509 = scalar_lea.vmem [#allocation1], 2
    %510 = vst [vmem:[%s509] ss:$9 sm:$0xff] %v359
    %s511 = scalar_lea.vmem [#allocation1], 3
    %512 = vst [vmem:[%s511] ss:$9 sm:$0xff] %v364
    %s513 = scalar_lea.vmem [#allocation1], 4
    %514 = vst [vmem:[%s513] ss:$9 sm:$0xff] %v369
    %s515 = scalar_lea.vmem [#allocation1], 5
    %516 = vst [vmem:[%s515] ss:$9 sm:$0xff] %v374
    %s517 = scalar_lea.vmem [#allocation1], 6
    %518 = vst [vmem:[%s517] ss:$9 sm:$0xff] %v379
    %v519 = vld [vmem:[#allocation1 + $0x12] sm:$0xff]
    %520 = vst [vmem:[#allocation1] ss:$9 sm:$0xff] %v383
    %521 = vst [vmem:[%s507] ss:$9 sm:$0xff] %v385
    %522 = vst [vmem:[%s509] ss:$9 sm:$0xff] %v388
    %523 = vst [vmem:[%s511] ss:$9 sm:$0xff] %v391
    %524 = vst [vmem:[%s513] ss:$9 sm:$0xff] %v394
    %525 = vst [vmem:[%s515] ss:$9 sm:$0xff] %v397
    %526 = vst [vmem:[%s517] ss:$9 sm:$0xff] %v400
    %v527 = vld [vmem:[#allocation1 + $0x12] sm:$0xff]
    %v530 = vpack.c.bf16 %v519, %v519
    %v531 = vpack.c.bf16 %v527, %v527
    %vm532 = vcmask 56320
    %v534 = vsel %vm532, %v504, 0
    %vm536 = vcmask 1042432
    %vm537 = vcmask 1043456
    %v538 = vsel %vm536, 4294967295, 65535
    %v539 = vsel %vm537, %v538, 0
    %v541 = vand.u32 %v530, %v539
    %543 = vmatpush.bf16.msra.mxu0 0
    %544 = vmatpush.bf16.msra.mxu0 0
    %545 = vmatpush.bf16.msra.mxu0 0
    %546 = vmatpush.bf16.msra.mxu0 0
    %547 = vmatpush.bf16.msra.mxu0 0
    %548 = vmatpush.bf16.msra.mxu0 0
    %549 = vmatpush.bf16.msra.mxu0 0
    %550 = vmatpush.bf16.msra.mxu0 %v541
    %551 = vmatmul.bf16.gmra.mxu0 %v534
    %v552 = vpop.f32.mrf.mxu0
    %v553 = vadd.f32 0.0, %v552
    %v554 = vpop.f32.mrf.mxu0
    %555 = vdwg.mxu0
    %v557 = vsel %vm532, %v505, 0
    %v560 = vand.u32 %v531, %v539
    %562 = vmatpush.bf16.msra.mxu0 0
    %563 = vmatpush.bf16.msra.mxu0 0
    %564 = vmatpush.bf16.msra.mxu0 0
    %565 = vmatpush.bf16.msra.mxu0 0
    %566 = vmatpush.bf16.msra.mxu0 0
    %567 = vmatpush.bf16.msra.mxu0 0
    %568 = vmatpush.bf16.msra.mxu0 0
    %569 = vmatpush.bf16.msra.mxu0 %v560
    %570 = vmatmul.bf16.gmra.mxu0 %v557
    %v571 = vpop.f32.mrf.mxu0
    %v572 = vadd.f32 0.0, %v571
    %v573 = vpop.f32.mrf.mxu0
    %574 = vdwg.mxu0
    %v577 = vrot.slane %v553, 1
    %v578 = vrot.slane %v553, 2
    %v579 = vrot.slane %v553, 3
    %v580 = vrot.slane %v553, 4
    %v581 = vrot.slane %v553, 5
    %v582 = vrot.slane %v553, 6
    %v583 = vrot.slane %v572, 1
    %v584 = vrot.slane %v572, 2
    %v585 = vrot.slane %v572, 3
    %v586 = vrot.slane %v572, 4
    %v587 = vrot.slane %v572, 5
    %v588 = vrot.slane %v572, 6
    %589 = vst [vmem:[#allocation1] ss:$9 sm:$0xff] %v553
    %s590 = scalar_lea.vmem [#allocation1], 1
    %591 = vst [vmem:[%s590] ss:$9 sm:$0xff] %v577
    %s592 = scalar_lea.vmem [#allocation1], 2
    %593 = vst [vmem:[%s592] ss:$9 sm:$0xff] %v578
    %s594 = scalar_lea.vmem [#allocation1], 3
    %595 = vst [vmem:[%s594] ss:$9 sm:$0xff] %v579
    %s596 = scalar_lea.vmem [#allocation1], 4
    %597 = vst [vmem:[%s596] ss:$9 sm:$0xff] %v580
    %s598 = scalar_lea.vmem [#allocation1], 5
    %599 = vst [vmem:[%s598] ss:$9 sm:$0xff] %v581
    %s600 = scalar_lea.vmem [#allocation1], 6
    %601 = vst [vmem:[%s600] ss:$9 sm:$0xff] %v582
    %s602 = scalar_lea.vmem [#allocation1], 7
    %603 = vst [vmem:[%s602] ss:$9 sm:$0xff] %v572
    %v604 = vld [vmem:[#allocation1] sm:$0xff]
    %605 = vst [vmem:[#allocation1] ss:$9 sm:$0xff] %v583
    %606 = vst [vmem:[%s590] ss:$9 sm:$0xff] %v584
    %607 = vst [vmem:[%s592] ss:$9 sm:$0xff] %v585
    %608 = vst [vmem:[%s594] ss:$9 sm:$0xff] %v586
    %609 = vst [vmem:[%s596] ss:$9 sm:$0xff] %v587
    %610 = vst [vmem:[%s598] ss:$9 sm:$0xff] %v588
    %v611 = vld [vmem:[#allocation1] sm:$0xff]
    %v614 = vpack.c.bf16 %v611, %v604
    %v615 = vld [vmem:[%s2] sm:$0xf]
    %v616 = vld [vmem:[%s2 + $0x4] sm:$0xf]
    %v617 = vld [vmem:[%s2 + $0x8] sm:$0xf]
    %v618 = vld [vmem:[%s2 + $0xc] sm:$0xf]
    %v619 = vld [vmem:[%s2 + $0x10] sm:$0xf]
    %v620 = vld [vmem:[%s2 + $0x14] sm:$0xf]
    %v621 = vld [vmem:[%s2 + $0x18] sm:$0xf]
    %v622 = vld [vmem:[%s2 + $0x1c] sm:$0xf]
    %v623 = vld [vmem:[%s2 + $0x20] sm:$0xf]
    %v624 = vld [vmem:[%s2 + $0x24] sm:$0xf]
    %v625 = vld [vmem:[%s2 + $0x28] sm:$0xf]
    %v626 = vld [vmem:[%s2 + $0x2c] sm:$0xf]
    %v627 = vld [vmem:[%s2 + $0x30] sm:$0xf]
    %v628 = vld [vmem:[%s2 + $0x34] sm:$0xf]
    %v629 = vld [vmem:[%s2 + $0x38] sm:$0xf]
    %v630 = vld [vmem:[%s2 + $0x3c] sm:$0xf]
    %v647 = vunpack.c.l.b16 %v615
    %v648 = vunpack.c.l.b16 %v616
    %v649 = vunpack.c.l.b16 %v617
    %v650 = vunpack.c.l.b16 %v618
    %v651 = vunpack.c.l.b16 %v619
    %v652 = vunpack.c.l.b16 %v620
    %v653 = vunpack.c.l.b16 %v621
    %v654 = vunpack.c.l.b16 %v622
    %v655 = vunpack.c.l.b16 %v623
    %v656 = vunpack.c.l.b16 %v624
    %v657 = vunpack.c.l.b16 %v625
    %v658 = vunpack.c.l.b16 %v626
    %v659 = vunpack.c.l.b16 %v627
    %v660 = vunpack.c.l.b16 %v628
    %v661 = vunpack.c.l.b16 %v629
    %v662 = vunpack.c.l.b16 %v630
    %v663 = vpack.c.b16 %v648, %v647
    %v664 = vpack.c.b16 %v650, %v649
    %v665 = vpack.c.b16 %v652, %v651
    %v666 = vpack.c.b16 %v654, %v653
    %v667 = vpack.c.b16 %v656, %v655
    %v668 = vpack.c.b16 %v658, %v657
    %v669 = vpack.c.b16 %v660, %v659
    %v670 = vpack.c.b16 %v662, %v661
    %679 = vmatpush.bf16.msra.mxu0 %v670
    %680 = vmatpush.bf16.msra.mxu0 %v669
    %681 = vmatpush.bf16.msra.mxu0 %v668
    %682 = vmatpush.bf16.msra.mxu0 %v667
    %683 = vmatpush.bf16.msra.mxu0 %v666
    %684 = vmatpush.bf16.msra.mxu0 %v665
    %685 = vmatpush.bf16.msra.mxu0 %v664
    %686 = vmatpush.bf16.msra.mxu0 %v663
    %687 = vmatmul.bf16.gmra.mxu0 %v614
    %v688 = vpop.f32.mrf.mxu0
    %v689 = vadd.f32 0.0, %v688
    %v690 = vpop.f32.mrf.mxu0
    %v691 = vadd.f32 0.0, %v690
    %692 = vdwg.mxu0
    %v695 = vrot.slane %v689, 1
    %v696 = vrot.slane %v689, 2
    %v697 = vrot.slane %v689, 3
    %v698 = vrot.slane %v689, 4
    %v699 = vrot.slane %v689, 5
    %v700 = vrot.slane %v689, 6
    %v701 = vrot.slane %v689, 7
    %v702 = vrot.slane %v691, 1
    %v703 = vrot.slane %v691, 2
    %v704 = vrot.slane %v691, 3
    %v705 = vrot.slane %v691, 4
    %v706 = vrot.slane %v691, 5
    %707 = vst [vmem:[#allocation1] ss:$9 sm:$0xff] %v689
    %s708 = scalar_lea.vmem [#allocation1], 1
    %709 = vst [vmem:[%s708] ss:$9 sm:$0xff] %v695
    %s710 = scalar_lea.vmem [#allocation1], 2
    %711 = vst [vmem:[%s710] ss:$9 sm:$0xff] %v696
    %s712 = scalar_lea.vmem [#allocation1], 3
    %713 = vst [vmem:[%s712] ss:$9 sm:$0xff] %v697
    %s714 = scalar_lea.vmem [#allocation1], 4
    %715 = vst [vmem:[%s714] ss:$9 sm:$0xff] %v698
    %s716 = scalar_lea.vmem [#allocation1], 5
    %717 = vst [vmem:[%s716] ss:$9 sm:$0xff] %v699
    %s718 = scalar_lea.vmem [#allocation1], 6
    %719 = vst [vmem:[%s718] ss:$9 sm:$0xff] %v700
    %v720 = vld [vmem:[#allocation1] sm:$0xff]
    %721 = vst [vmem:[#allocation1] ss:$9 sm:$0xff] %v701
    %722 = vst [vmem:[%s708] ss:$9 sm:$0xff] %v691
    %723 = vst [vmem:[%s710] ss:$9 sm:$0xff] %v702
    %724 = vst [vmem:[%s712] ss:$9 sm:$0xff] %v703
    %725 = vst [vmem:[%s714] ss:$9 sm:$0xff] %v704
    %726 = vst [vmem:[%s716] ss:$9 sm:$0xff] %v705
    %727 = vst [vmem:[%s718] ss:$9 sm:$0xff] %v706
    %v728 = vld [vmem:[#allocation1] sm:$0xff]
    %v731 = vadd.f32 %v28, %v720
    %v732 = vadd.f32 %v29, %v728
    %v733 = vsel %vm30, %v731, 0.0
    %v734 = vrot.slane %v733, 4
    %v735 = vadd.f32 %v733, %v734
    %v736 = vrot.slane %v735, 2
    %v737 = vadd.f32 %v735, %v736
    %v738 = vrot.slane %v737, 1
    %v739 = vadd.f32 %v737, %v738
    %v740 = vsel %vm30, %v732, 0.0
    %v741 = vrot.slane %v740, 4
    %v742 = vadd.f32 %v740, %v741
    %v743 = vrot.slane %v742, 2
    %v744 = vadd.f32 %v742, %v743
    %v745 = vrot.slane %v744, 1
    %v746 = vadd.f32 %v744, %v745
    %v747 = vrcp.pop 7.0
    %v748 = vmul.f32 7.0, %v747
    %v749 = vsub.f32 1.0, %v748
    %v750 = vmul.f32 %v747, %v749
    %v751 = vadd.f32 %v747, %v750
    %vm752 = vweird.f32 %v747
    %v753 = vsel %vm752, %v747, %v751
    %v754 = vmul.f32 %v739, %v753
    %v755 = vmul.f32 %v746, %v753
    %v756 = vpack.c.bf16 %v754, %v754
    %v757 = vpack.c.bf16 %v755, %v755
    %v758 = vld [vmem:[%s5] sm:$0xf]
    %v759 = vld [vmem:[%s5 + $0x4] sm:$0xf]
    %v760 = vld [vmem:[%s5 + $0x8] sm:$0xf]
    %v761 = vld [vmem:[%s5 + $0xc] sm:$0xf]
    %v762 = vld [vmem:[%s5 + $0x10] sm:$0xf]
    %v763 = vld [vmem:[%s5 + $0x14] sm:$0xf]
    %v764 = vld [vmem:[%s5 + $0x18] sm:$0xf]
    %v765 = vld [vmem:[%s5 + $0x1c] sm:$0xf]
    %v766 = vld [vmem:[%s5 + $0x20] sm:$0xf]
    %v767 = vld [vmem:[%s5 + $0x24] sm:$0xf]
    %v768 = vld [vmem:[%s5 + $0x28] sm:$0xf]
    %v769 = vld [vmem:[%s5 + $0x2c] sm:$0xf]
    %v770 = vld [vmem:[%s5 + $0x30] sm:$0xf]
    %v771 = vld [vmem:[%s5 + $0x34] sm:$0xf]
    %v772 = vld [vmem:[%s5 + $0x38] sm:$0xf]
    %v773 = vld [vmem:[%s5 + $0x3c] sm:$0xf]
    %v774 = vld [vmem:[%s6] sm:$0x1]
    %v776 = vperm.slane %v774, 0
    %v780 = vunpack.c.l.b16 %v756
    %v781 = vunpack.c.l.b16 %v757
    %v782 = vsel %vm350, %v781, %v780
    %v783 = vpack.c.b16 %v782, %v782
    %v801 = vunpack.c.l.b16 %v758
    %v802 = vunpack.c.l.b16 %v759
    %v803 = vunpack.c.l.b16 %v760
    %v804 = vunpack.c.l.b16 %v761
    %v805 = vunpack.c.l.b16 %v762
    %v806 = vunpack.c.l.b16 %v763
    %v807 = vunpack.c.l.b16 %v764
    %v808 = vunpack.c.l.b16 %v765
    %v809 = vunpack.c.l.b16 %v766
    %v810 = vunpack.c.l.b16 %v767
    %v811 = vunpack.c.l.b16 %v768
    %v812 = vunpack.c.l.b16 %v769
    %v813 = vunpack.c.l.b16 %v770
    %v814 = vunpack.c.l.b16 %v771
    %v815 = vunpack.c.l.b16 %v772
    %v816 = vunpack.c.l.b16 %v773
    %v817 = vpack.c.b16 %v802, %v801
    %v818 = vpack.c.b16 %v804, %v803
    %v819 = vpack.c.b16 %v806, %v805
    %v820 = vpack.c.b16 %v808, %v807
    %v821 = vpack.c.b16 %v810, %v809
    %v822 = vpack.c.b16 %v812, %v811
    %v823 = vpack.c.b16 %v814, %v813
    %v824 = vpack.c.b16 %v816, %v815
    %833 = vmatpush.bf16.msra.mxu0 %v824
    %834 = vmatpush.bf16.msra.mxu0 %v823
    %835 = vmatpush.bf16.msra.mxu0 %v822
    %836 = vmatpush.bf16.msra.mxu0 %v821
    %837 = vmatpush.bf16.msra.mxu0 %v820
    %838 = vmatpush.bf16.msra.mxu0 %v819
    %839 = vmatpush.bf16.msra.mxu0 %v818
    %840 = vmatpush.bf16.msra.mxu0 %v817
    %841 = vmatmul.bf16.gmra.mxu0 %v783
    %v842 = vpop.f32.mrf.mxu0
    %v843 = vadd.f32 %v776, %v842
    %v844 = vpop.f32.mrf.mxu0
    %845 = vdwg.mxu0
    %846 = vst [vmem:[#allocation2] sm:$0x3] %v843
    // Predicated region
    $region30: #{video_transformer_motion_forward.3} parent=1 // pred_check
      _
    $region31: #{video_transformer_motion_forward.3} parent=1 // pred_check_branch
      %848 = sbr.rel (0) target = $region33
    $region32: #{video_transformer_motion_forward.3} parent=1 // pred_region
      %850 = vsyncadd [#allocation3], 0
      %s852 = sshll.u32 [#allocation2], 4
      %s853 = int_to_ptr.vmem [resolvable:$true] %s852
      %s854 = sshll.u32 %s7, 4
      %s855 = int_to_ptr.hbm [resolvable:$true] %s854
      %857 = dma.vmem_to_hbm [thread:$0]  %s853, 32, %s855, [#allocation3]
    $region33: #{video_transformer_motion_forward.3} parent=1 // pred_fallthru
      _
    // Predicated region
    $region34: #{video_transformer_motion_forward.3} parent=1 // pred_check
      _
    $region35: #{video_transformer_motion_forward.3} parent=1 // pred_check_branch
      %859 = sbr.rel (0) target = $region37
    $region36: #{video_transformer_motion_forward.3} parent=1 // pred_region
      %861 = dma.done [#allocation3], 32
    $region37: #{video_transformer_motion_forward.3} parent=1 // pred_fallthru
      _
    %862 = vsyncpa [#allocation3], 1

</llo_original>
